<compile_context>
chip_gen: v5e
topology: v5e:2x2
jax: 0.10.0
libtpu: 0.0.40
codegen_flags: <defaults>
</compile_context>

<pallas_src>
import math
import jax
import jax.numpy as jnp
from jax.experimental import pallas as pl
from jax.experimental.pallas import tpu as pltpu

# --- model config (matches the PyTorch module instantiation) ---
NUM_LAYERS = 2
HIDDEN = 32
NUM_HEADS = 4
FF_DIM = 64
VOCAB = 128
SEQ_LEN = 32                      # fixed by the module (self.seq_length = 32)
HEAD_DIM = HIDDEN // NUM_HEADS    # 8
FOLDED = NUM_HEADS * SEQ_LEN      # 128 head-folded K/V row count
LN_EPS = 1e-5

# Set to jnp.bfloat16 on v6e/v7x for ~2x effective MXU throughput once the MXU
# is the binding unit; accumulation stays f32 via preferred_element_type and
# all elementwise math stays f32 (v5e-safe).
MXU_DTYPE = jnp.float32

# Packed slab row layouts (all slabs are 128 lanes wide).
W_ROWS = 160   # 0:32 [Wq|Wk|Wv|Wout], 32:64 ff1, 64:128 ff2, 128:160 head
B_ROWS = 8     # biases + LayerNorm params, one row each
C_ROWS = 136   # 0:128 [rep | kv_mask | 0], 128:132 head-block selector, pad


def _layer_norm(y, w, b):
    mu = jnp.mean(y, axis=-1, keepdims=True)
    var = jnp.mean((y - mu) ** 2, axis=-1, keepdims=True)
    return (y - mu) * jax.lax.rsqrt(var + LN_EPS) * w + b


def tiny_llm_kernel(x_ref, w_ref, b_ref, c_ref, o_ref):
    f32 = jnp.float32
    m_rows = x_ref.shape[0]                       # Bt * SEQ_LEN (static)
    bt = m_rows // SEQ_LEN

    def mm(a, bmat):                              # MXU matmul, f32 accumulation
        return jnp.dot(a.astype(MXU_DTYPE), bmat.astype(MXU_DTYPE),
                       preferred_element_type=f32)

    def mm_nt(a, bmat):                           # a @ bmat.T (contract last dims)
        return jax.lax.dot_general(
            a.astype(MXU_DTYPE), bmat.astype(MXU_DTYPE),
            dimension_numbers=(((1,), (1,)), ((), ())),
            preferred_element_type=f32)

    # ---- one-time loads (hoisted out of the layer loop) ----
    x = x_ref[...].astype(f32)                                 # (M, H)

    w_attn = w_ref[0:HIDDEN, :]                                # (H,128) [Wq|Wk|Wv|Wout]
    w_ff1 = w_ref[HIDDEN:2 * HIDDEN, 0:FF_DIM]                 # (H, FF)
    w_ff2 = w_ref[2 * HIDDEN:2 * HIDDEN + FF_DIM, 0:HIDDEN]    # (FF, H)
    w_out = w_ref[0:HIDDEN, 3 * HIDDEN:4 * HIDDEN]             # (H, H)
    w_head = w_ref[2 * HIDDEN + FF_DIM:W_ROWS, :]              # (H, VOCAB)

    b_qkvo = b_ref[0:1, :].astype(f32)                         # (1,128) [bq|bk|bv|b_out]
    b_out = b_ref[0:1, 3 * HIDDEN:4 * HIDDEN].astype(f32)      # (1, H)
    b_ff1 = b_ref[1:2, 0:FF_DIM].astype(f32)
    b_ff2 = b_ref[2:3, 0:HIDDEN].astype(f32)
    b_head = b_ref[3:4, :].astype(f32)
    ln1_w = b_ref[4:5, 0:HIDDEN].astype(f32)
    ln1_b = b_ref[5:6, 0:HIDDEN].astype(f32)
    ln2_w = b_ref[6:7, 0:HIDDEN].astype(f32)
    ln2_b = b_ref[7:8, 0:HIDDEN].astype(f32)

    rep = c_ref[0:FOLDED, 0:SEQ_LEN]                           # (NH*S, S) 0/1 replication
    kvm = c_ref[0:FOLDED, SEQ_LEN:SEQ_LEN + HIDDEN]            # (NH*S, H) per-head lane mask
    sel = c_ref[FOLDED:FOLDED + NUM_HEADS, :]                  # (NH, NH*S) head-block selector
    kvm_f = kvm.astype(f32)
    sel_f = sel.astype(f32)

    scale = 1.0 / math.sqrt(HEAD_DIM)

    # ---- shared transformer layer applied NUM_LAYERS times (same weights) ----
    for _ in range(NUM_LAYERS):
        # Fused projection over all Bt sequences at once.
        # Output lanes: 0:H -> q, H:2H -> k, 2H:3H -> v, 3H:4H -> x@Wout (discarded).
        qkv = mm(x, w_attn) + b_qkvo                           # (M, 128)

        attn_rows = []
        for bi in range(bt):                                   # static unroll, Bt <= 8
            r0 = bi * SEQ_LEN
            q_b = qkv[r0:r0 + SEQ_LEN, 0:HIDDEN] * scale       # (S, H)
            k_b = qkv[r0:r0 + SEQ_LEN, HIDDEN:2 * HIDDEN]      # (S, H)
            v_b = qkv[r0:r0 + SEQ_LEN, 2 * HIDDEN:3 * HIDDEN]  # (S, H)

            # Head-fold K/V to (NH*S, H) via MXU replication + one vmul mask.
            k_exp = mm(rep, k_b) * kvm_f                       # (NH*S, H)
            v_exp = mm(rep, v_b) * kvm_f                       # (NH*S, H)

            scores = mm_nt(q_b, k_exp)                         # (S, NH*S)

            # Per-(row, head-block) max, broadcast back through the disjoint
            # head-block selector rows (safe per-head softmax shift).
            blk_max = jnp.zeros((SEQ_LEN, FOLDED), f32)
            for h in range(NUM_HEADS):
                bm_h = jnp.max(scores[:, h * SEQ_LEN:(h + 1) * SEQ_LEN],
                               axis=-1, keepdims=True)         # (S, 1)
                blk_max = blk_max + bm_h * sel_f[h:h + 1, :]

            p = jnp.exp(scores - blk_max)                      # (S, NH*S) f32
            pv = mm(p, v_exp)                                  # (S, H) unnormalized
            denom = mm(p, kvm)                                 # (S, H) per-head sums, bcast per 8 lanes
            attn_rows.append(pv * pl.reciprocal(denom, approx=False))

        attn = attn_rows[0] if bt == 1 else jnp.concatenate(attn_rows, axis=0)
        attn = mm(attn, w_out) + b_out                         # (M, H)

        y = _layer_norm(x + attn, ln1_w, ln1_b)
        h1 = jnp.maximum(mm(y, w_ff1) + b_ff1, 0.0)
        ff = mm(h1, w_ff2) + b_ff2
        x = _layer_norm(y + ff, ln2_w, ln2_b)

    # Vocab head: the lane-dense (M, 128) logits tile is the only HBM store.
    o_ref[...] = (mm(x, w_head) + b_head).astype(o_ref.dtype)


def _choose_batch_tile(batch):
    # Up to 8 sequences per grid step (M = 256 rows feeds the MXU), but always
    # keep >= 2 grid steps when batch >= 2 so both v7x TensorCores get work.
    return max(1, min(8, (batch + 1) // 2))


def tiny_llm_pallas_call(x_emb, packed):
    B, S, H = x_emb.shape
    assert S == SEQ_LEN and H == HIDDEN
    bt = _choose_batch_tile(B)
    nsteps = (B + bt - 1) // bt
    b_pad = nsteps * bt
    if b_pad != B:
        x_emb = jnp.concatenate(
            [x_emb, jnp.zeros((b_pad - B, S, H), x_emb.dtype)], axis=0)
    x2 = x_emb.reshape(b_pad * S, H)
    m = bt * S

    w, b, c = packed["w"], packed["b"], packed["c"]

    # Advisory cost estimate for XLA's scheduler.
    per_layer = (2 * SEQ_LEN * HIDDEN * 128               # fused qkv projection
                 + 2 * (2 * FOLDED * SEQ_LEN * HIDDEN)    # k_exp + v_exp replication
                 + 2 * SEQ_LEN * HIDDEN * FOLDED          # scores
                 + 2 * SEQ_LEN * FOLDED * HIDDEN          # pv
                 + 2 * SEQ_LEN * FOLDED * HIDDEN          # denom
                 + 2 * SEQ_LEN * HIDDEN * HIDDEN          # out_proj
                 + 2 * SEQ_LEN * HIDDEN * FF_DIM          # ff1
                 + 2 * SEQ_LEN * FF_DIM * HIDDEN)         # ff2
    flops_per_seq = NUM_LAYERS * per_layer + 2 * SEQ_LEN * HIDDEN * VOCAB
    trans_per_seq = NUM_LAYERS * (SEQ_LEN * FOLDED + SEQ_LEN * HIDDEN) + 4 * SEQ_LEN
    weight_bytes = (w.size * w.dtype.itemsize + b.size * b.dtype.itemsize
                    + c.size * c.dtype.itemsize)
    bytes_accessed = (x2.size * 4 + b_pad * SEQ_LEN * VOCAB * 4
                      + nsteps * weight_bytes)
    cost = pl.CostEstimate(flops=int(flops_per_seq * b_pad),
                           transcendentals=int(trans_per_seq * b_pad),
                           bytes_accessed=int(bytes_accessed))

    out = pl.pallas_call(
        tiny_llm_kernel,
        out_shape=jax.ShapeDtypeStruct((b_pad * S, VOCAB), jnp.float32),
        grid=(nsteps,),
        in_specs=[
            pl.BlockSpec((m, HIDDEN), lambda i: (i, 0)),        # Bt sequences of x
            pl.BlockSpec(w.shape, lambda i: (0, 0)),            # weight slab (resident)
            pl.BlockSpec(b.shape, lambda i: (0, 0)),            # bias/LN slab
            pl.BlockSpec(c.shape, lambda i: (0, 0)),            # fold constants slab
        ],
        out_specs=pl.BlockSpec((m, VOCAB), lambda i: (i, 0)),
        compiler_params=pltpu.CompilerParams(dimension_semantics=("parallel",)),
        cost_estimate=cost,
    )(x2, w, b, c)
    return out.reshape(b_pad, S, VOCAB)[:B]


def prepare_kernel_weights(params):
    """One-time host-side packing of PyTorch-convention weights into 3
    lane-dense slabs.  Call once and reuse across forward calls."""
    H, FF, V = HIDDEN, FF_DIM, VOCAB
    f32 = jnp.float32

    in_w = params["in_proj_w"]                                  # (3H, H) torch (out,in)
    w = jnp.zeros((W_ROWS, 128), f32)
    w = w.at[0:H, 0:H].set(in_w[0:H].T)                         # Wq
    w = w.at[0:H, H:2 * H].set(in_w[H:2 * H].T)                 # Wk
    w = w.at[0:H, 2 * H:3 * H].set(in_w[2 * H:3 * H].T)         # Wv
    w = w.at[0:H, 3 * H:4 * H].set(params["out_proj_w"].T)      # Wout
    w = w.at[H:2 * H, 0:FF].set(params["ff1_w"].T)
    w = w.at[2 * H:2 * H + FF, 0:H].set(params["ff2_w"].T)
    w = w.at[2 * H + FF:W_ROWS, 0:V].set(params["out_w"].T)

    b = jnp.zeros((B_ROWS, 128), f32)
    in_b = params["in_proj_b"]
    b = b.at[0, 0:H].set(in_b[0:H])
    b = b.at[0, H:2 * H].set(in_b[H:2 * H])
    b = b.at[0, 2 * H:3 * H].set(in_b[2 * H:3 * H])
    b = b.at[0, 3 * H:4 * H].set(params["out_proj_b"])
    b = b.at[1, 0:FF].set(params["ff1_b"])
    b = b.at[2, 0:H].set(params["ff2_b"])
    b = b.at[3, 0:V].set(params["out_b"])
    b = b.at[4, 0:H].set(params["ln1_w"])
    b = b.at[5, 0:H].set(params["ln1_b"])
    b = b.at[6, 0:H].set(params["ln2_w"])
    b = b.at[7, 0:H].set(params["ln2_b"])

    # Static head-folding constants (hoisted out of the kernel body).
    rows = jnp.arange(FOLDED)
    rep = (rows[:, None] % SEQ_LEN == jnp.arange(SEQ_LEN)[None, :]).astype(f32)
    kvm = (rows[:, None] // SEQ_LEN
           == (jnp.arange(HIDDEN)[None, :] // HEAD_DIM)).astype(f32)
    sel = (jnp.arange(NUM_HEADS)[:, None]
           == (jnp.arange(FOLDED)[None, :] // SEQ_LEN)).astype(f32)
    c = jnp.zeros((C_ROWS, 128), f32)
    c = c.at[0:FOLDED, 0:SEQ_LEN].set(rep)
    c = c.at[0:FOLDED, SEQ_LEN:SEQ_LEN + HIDDEN].set(kvm)
    c = c.at[FOLDED:FOLDED + NUM_HEADS, :].set(sel)

    return {"w": w.astype(MXU_DTYPE), "b": b, "c": c.astype(MXU_DTYPE)}


def create_pos_encoding(hidden, max_len):
    pos = jnp.arange(max_len, dtype=jnp.float32)[:, None]
    div = jnp.exp(jnp.arange(0, hidden, 2, dtype=jnp.float32)
                  * (-math.log(10000.0) / hidden))
    pe = jnp.zeros((max_len, hidden), dtype=jnp.float32)
    pe = pe.at[:, 0::2].set(jnp.sin(pos * div))
    pe = pe.at[:, 1::2].set(jnp.cos(pos * div))
    return pe


def init_params(key):
    ks = jax.random.split(key, 9)

    def u(k, shape, fan_in):
        bound = 1.0 / math.sqrt(fan_in)
        return jax.random.uniform(k, shape, jnp.float32, -bound, bound)

    return {
        "embedding": jax.random.normal(ks[0], (VOCAB, HIDDEN), jnp.float32),
        "pos_enc": create_pos_encoding(HIDDEN, SEQ_LEN),
        # shared transformer layer weights (PyTorch layout)
        "in_proj_w": u(ks[1], (3 * HIDDEN, HIDDEN), HIDDEN),
        "in_proj_b": jnp.zeros((3 * HIDDEN,), jnp.float32),
        "out_proj_w": u(ks[2], (HIDDEN, HIDDEN), HIDDEN),
        "out_proj_b": jnp.zeros((HIDDEN,), jnp.float32),
        "ff1_w": u(ks[3], (FF_DIM, HIDDEN), HIDDEN),
        "ff1_b": u(ks[4], (FF_DIM,), HIDDEN),
        "ff2_w": u(ks[5], (HIDDEN, FF_DIM), FF_DIM),
        "ff2_b": u(ks[6], (HIDDEN,), FF_DIM),
        "ln1_w": jnp.ones((HIDDEN,), jnp.float32),
        "ln1_b": jnp.zeros((HIDDEN,), jnp.float32),
        "ln2_w": jnp.ones((HIDDEN,), jnp.float32),
        "ln2_b": jnp.zeros((HIDDEN,), jnp.float32),
        # output head
        "out_w": u(ks[7], (VOCAB, HIDDEN), HIDDEN),
        "out_b": u(ks[8], (VOCAB,), HIDDEN),
    }


def tiny_llm_forward(ids, params, packed):
    """ids: (B, L) int token ids.  `packed` = prepare_kernel_weights(params),
    computed once outside the per-call path (review item)."""
    B, L = ids.shape
    # _pad_or_truncate (plain JAX glue, as in the module)
    if L < SEQ_LEN:
        ids = jnp.concatenate(
            [ids, jnp.zeros((B, SEQ_LEN - L), dtype=ids.dtype)], axis=1)
    else:
        ids = ids[:, :SEQ_LEN]
    # embedding lookup + positional encoding stay in plain JAX (data-dependent
    # gather has no cheap Pallas equivalent at this size).
    x = jnp.take(params["embedding"], ids, axis=0) + params["pos_enc"][None]
    # single fused kernel: NUM_LAYERS x shared transformer layer + vocab head
    return tiny_llm_pallas_call(x, packed)


if __name__ == "__main__":
    key = jax.random.PRNGKey(0)
    pkey, dkey = jax.random.split(key)
    params = init_params(pkey)
    packed = prepare_kernel_weights(params)          # one-time weight packing
    # batch=2, seq=8 token ids -> padded to 32 inside forward (like the module)
    ids = jax.random.randint(dkey, (2, 8), 0, VOCAB, dtype=jnp.int32)
    logits = jax.block_until_ready(tiny_llm_forward(ids, params, packed))
    assert logits.shape == (2, SEQ_LEN, VOCAB)
    assert bool(jnp.all(jnp.isfinite(logits)))
    print("KERNEL_OK")
</pallas_src>

<mosaic_0001>
module attributes {stable_mosaic.version = 11 : i64} {
  func.func @tiny_llm_kernel(%arg0: i32, %arg1: memref<32x32xf32, #tpu.memory_space<vmem>>, %arg2: memref<160x128xf32, #tpu.memory_space<vmem>>, %arg3: memref<8x128xf32, #tpu.memory_space<vmem>>, %arg4: memref<136x128xf32, #tpu.memory_space<vmem>>, %arg5: memref<32x128xf32, #tpu.memory_space<vmem>>) attributes {dimension_semantics = [#tpu.dimension_semantics<parallel>], iteration_bounds = array<i64: 2>, scalar_prefetch = 0 : i64, scratch_operands = 0 : i64, tpu.core_type = #tpu.core_type<tc>, window_params = [{transform_indices = @transform_0, window_bounds = array<i64: 32, 32>}, {pipeline_mode = #tpu.pipeline_mode<synchronous>, transform_indices = @transform_1, window_bounds = array<i64: 160, 128>}, {pipeline_mode = #tpu.pipeline_mode<synchronous>, transform_indices = @transform_2, window_bounds = array<i64: 8, 128>}, {pipeline_mode = #tpu.pipeline_mode<synchronous>, transform_indices = @transform_3, window_bounds = array<i64: 136, 128>}, {transform_indices = @transform_4, window_bounds = array<i64: 32, 128>}]} {
    %c0 = arith.constant 0 : index
    %c0_0 = arith.constant 0 : index
    %0 = vector.load %arg1[%c0, %c0_0] : memref<32x32xf32, #tpu.memory_space<vmem>>, vector<32x32xf32>
    %c0_1 = arith.constant 0 : index
    %c0_2 = arith.constant 0 : index
    %1 = vector.load %arg2[%c0_1, %c0_2] : memref<160x128xf32, #tpu.memory_space<vmem>>, vector<32x128xf32>
    %c32 = arith.constant 32 : index
    %c0_3 = arith.constant 0 : index
    %2 = vector.load %arg2[%c32, %c0_3] : memref<160x128xf32, #tpu.memory_space<vmem>>, vector<32x64xf32>
    %c64 = arith.constant 64 : index
    %c0_4 = arith.constant 0 : index
    %3 = vector.load %arg2[%c64, %c0_4] : memref<160x128xf32, #tpu.memory_space<vmem>>, vector<64x32xf32>
    %c0_5 = arith.constant 0 : index
    %c96 = arith.constant 96 : index
    %4 = vector.load %arg2[%c0_5, %c96] : memref<160x128xf32, #tpu.memory_space<vmem>>, vector<32x32xf32>
    %c128 = arith.constant 128 : index
    %c0_6 = arith.constant 0 : index
    %5 = vector.load %arg2[%c128, %c0_6] : memref<160x128xf32, #tpu.memory_space<vmem>>, vector<32x128xf32>
    %c0_7 = arith.constant 0 : index
    %c0_8 = arith.constant 0 : index
    %6 = vector.load %arg3[%c0_7, %c0_8] : memref<8x128xf32, #tpu.memory_space<vmem>>, vector<1x128xf32>
    %c0_9 = arith.constant 0 : index
    %c96_10 = arith.constant 96 : index
    %7 = vector.load %arg3[%c0_9, %c96_10] : memref<8x128xf32, #tpu.memory_space<vmem>>, vector<1x32xf32>
    %c1 = arith.constant 1 : index
    %c0_11 = arith.constant 0 : index
    %8 = vector.load %arg3[%c1, %c0_11] : memref<8x128xf32, #tpu.memory_space<vmem>>, vector<1x64xf32>
    %c2 = arith.constant 2 : index
    %c0_12 = arith.constant 0 : index
    %9 = vector.load %arg3[%c2, %c0_12] : memref<8x128xf32, #tpu.memory_space<vmem>>, vector<1x32xf32>
    %c3 = arith.constant 3 : index
    %c0_13 = arith.constant 0 : index
    %10 = vector.load %arg3[%c3, %c0_13] : memref<8x128xf32, #tpu.memory_space<vmem>>, vector<1x128xf32>
    %c4 = arith.constant 4 : index
    %c0_14 = arith.constant 0 : index
    %11 = vector.load %arg3[%c4, %c0_14] : memref<8x128xf32, #tpu.memory_space<vmem>>, vector<1x32xf32>
    %c5 = arith.constant 5 : index
    %c0_15 = arith.constant 0 : index
    %12 = vector.load %arg3[%c5, %c0_15] : memref<8x128xf32, #tpu.memory_space<vmem>>, vector<1x32xf32>
    %c6 = arith.constant 6 : index
    %c0_16 = arith.constant 0 : index
    %13 = vector.load %arg3[%c6, %c0_16] : memref<8x128xf32, #tpu.memory_space<vmem>>, vector<1x32xf32>
    %c7 = arith.constant 7 : index
    %c0_17 = arith.constant 0 : index
    %14 = vector.load %arg3[%c7, %c0_17] : memref<8x128xf32, #tpu.memory_space<vmem>>, vector<1x32xf32>
    %c0_18 = arith.constant 0 : index
    %c0_19 = arith.constant 0 : index
    %15 = vector.load %arg4[%c0_18, %c0_19] : memref<136x128xf32, #tpu.memory_space<vmem>>, vector<128x32xf32>
    %c0_20 = arith.constant 0 : index
    %c32_21 = arith.constant 32 : index
    %16 = vector.load %arg4[%c0_20, %c32_21] : memref<136x128xf32, #tpu.memory_space<vmem>>, vector<128x32xf32>
    %c128_22 = arith.constant 128 : index
    %c0_23 = arith.constant 0 : index
    %17 = vector.load %arg4[%c128_22, %c0_23] : memref<136x128xf32, #tpu.memory_space<vmem>>, vector<4x128xf32>
    %cst = arith.constant dense<0.000000e+00> : vector<32x128xf32>
    %18 = tpu.matmul %0, %1, %cst {dimension_numbers = #tpu.dot_dimension_numbers<[1], [0], [0], [1], [0, 0, 1, 1], [], []>} : vector<32x32xf32>, vector<32x128xf32>, vector<32x128xf32> -> vector<32x128xf32>
    %19 = vector.broadcast %6 : vector<1x128xf32> to vector<32x128xf32>
    %20 = arith.addf %18, %19 : vector<32x128xf32>
    %21 = vector.extract_strided_slice %20 {offsets = [0, 0], sizes = [32, 32], strides = [1, 1]} : vector<32x128xf32> to vector<32x32xf32>
    %cst_24 = arith.constant 0.353553385 : f32
    %22 = vector.broadcast %cst_24 : f32 to vector<32x32xf32>
    %23 = arith.mulf %21, %22 : vector<32x32xf32>
    %24 = vector.extract_strided_slice %20 {offsets = [0, 32], sizes = [32, 32], strides = [1, 1]} : vector<32x128xf32> to vector<32x32xf32>
    %25 = vector.extract_strided_slice %20 {offsets = [0, 64], sizes = [32, 32], strides = [1, 1]} : vector<32x128xf32> to vector<32x32xf32>
    %cst_25 = arith.constant dense<0.000000e+00> : vector<128x32xf32>
    %26 = tpu.matmul %15, %24, %cst_25 {dimension_numbers = #tpu.dot_dimension_numbers<[1], [0], [0], [1], [0, 0, 1, 1], [], []>} : vector<128x32xf32>, vector<32x32xf32>, vector<128x32xf32> -> vector<128x32xf32>
    %27 = arith.mulf %26, %16 : vector<128x32xf32>
    %cst_26 = arith.constant dense<0.000000e+00> : vector<128x32xf32>
    %28 = tpu.matmul %15, %25, %cst_26 {dimension_numbers = #tpu.dot_dimension_numbers<[1], [0], [0], [1], [0, 0, 1, 1], [], []>} : vector<128x32xf32>, vector<32x32xf32>, vector<128x32xf32> -> vector<128x32xf32>
    %29 = arith.mulf %28, %16 : vector<128x32xf32>
    %cst_27 = arith.constant dense<0.000000e+00> : vector<32x128xf32>
    %30 = tpu.matmul %23, %27, %cst_27 {dimension_numbers = #tpu.dot_dimension_numbers<[1], [1], [0], [0], [0, 0, 1, 0], [], []>} : vector<32x32xf32>, vector<128x32xf32>, vector<32x128xf32> -> vector<32x128xf32>
    %cst_28 = arith.constant 0.000000e+00 : f32
    %31 = vector.broadcast %cst_28 : f32 to vector<32x128xf32>
    %32 = vector.extract_strided_slice %30 {offsets = [0, 0], sizes = [32, 32], strides = [1, 1]} : vector<32x128xf32> to vector<32x32xf32>
    %cst_29 = arith.constant dense<0xFF800000> : vector<32xf32>
    %33 = vector.multi_reduction <maximumf>, %32, %cst_29 [1] : vector<32x32xf32> to vector<32xf32>
    %34 = vector.shape_cast %33 : vector<32xf32> to vector<32x1xf32>
    %35 = vector.extract_strided_slice %17 {offsets = [0, 0], sizes = [1, 128], strides = [1, 1]} : vector<4x128xf32> to vector<1x128xf32>
    %36 = vector.broadcast %34 : vector<32x1xf32> to vector<32x128xf32>
    %37 = vector.broadcast %35 : vector<1x128xf32> to vector<32x128xf32>
    %38 = arith.mulf %36, %37 : vector<32x128xf32>
    %39 = arith.addf %31, %38 : vector<32x128xf32>
    %40 = vector.extract_strided_slice %30 {offsets = [0, 32], sizes = [32, 32], strides = [1, 1]} : vector<32x128xf32> to vector<32x32xf32>
    %cst_30 = arith.constant dense<0xFF800000> : vector<32xf32>
    %41 = vector.multi_reduction <maximumf>, %40, %cst_30 [1] : vector<32x32xf32> to vector<32xf32>
    %42 = vector.shape_cast %41 : vector<32xf32> to vector<32x1xf32>
    %43 = vector.extract_strided_slice %17 {offsets = [1, 0], sizes = [1, 128], strides = [1, 1]} : vector<4x128xf32> to vector<1x128xf32>
    %44 = vector.broadcast %42 : vector<32x1xf32> to vector<32x128xf32>
    %45 = vector.broadcast %43 : vector<1x128xf32> to vector<32x128xf32>
    %46 = arith.mulf %44, %45 : vector<32x128xf32>
    %47 = arith.addf %39, %46 : vector<32x128xf32>
    %48 = vector.extract_strided_slice %30 {offsets = [0, 64], sizes = [32, 32], strides = [1, 1]} : vector<32x128xf32> to vector<32x32xf32>
    %cst_31 = arith.constant dense<0xFF800000> : vector<32xf32>
    %49 = vector.multi_reduction <maximumf>, %48, %cst_31 [1] : vector<32x32xf32> to vector<32xf32>
    %50 = vector.shape_cast %49 : vector<32xf32> to vector<32x1xf32>
    %51 = vector.extract_strided_slice %17 {offsets = [2, 0], sizes = [1, 128], strides = [1, 1]} : vector<4x128xf32> to vector<1x128xf32>
    %52 = vector.broadcast %50 : vector<32x1xf32> to vector<32x128xf32>
    %53 = vector.broadcast %51 : vector<1x128xf32> to vector<32x128xf32>
    %54 = arith.mulf %52, %53 : vector<32x128xf32>
    %55 = arith.addf %47, %54 : vector<32x128xf32>
    %56 = vector.extract_strided_slice %30 {offsets = [0, 96], sizes = [32, 32], strides = [1, 1]} : vector<32x128xf32> to vector<32x32xf32>
    %cst_32 = arith.constant dense<0xFF800000> : vector<32xf32>
    %57 = vector.multi_reduction <maximumf>, %56, %cst_32 [1] : vector<32x32xf32> to vector<32xf32>
    %58 = vector.shape_cast %57 : vector<32xf32> to vector<32x1xf32>
    %59 = vector.extract_strided_slice %17 {offsets = [3, 0], sizes = [1, 128], strides = [1, 1]} : vector<4x128xf32> to vector<1x128xf32>
    %60 = vector.broadcast %58 : vector<32x1xf32> to vector<32x128xf32>
    %61 = vector.broadcast %59 : vector<1x128xf32> to vector<32x128xf32>
    %62 = arith.mulf %60, %61 : vector<32x128xf32>
    %63 = arith.addf %55, %62 : vector<32x128xf32>
    %64 = arith.subf %30, %63 : vector<32x128xf32>
    %65 = math.exp %64 : vector<32x128xf32>
    %cst_33 = arith.constant dense<0.000000e+00> : vector<32x32xf32>
    %66 = tpu.matmul %65, %29, %cst_33 {dimension_numbers = #tpu.dot_dimension_numbers<[1], [0], [0], [1], [0, 0, 1, 1], [], []>} : vector<32x128xf32>, vector<128x32xf32>, vector<32x32xf32> -> vector<32x32xf32>
    %cst_34 = arith.constant dense<0.000000e+00> : vector<32x32xf32>
    %67 = tpu.matmul %65, %16, %cst_34 {dimension_numbers = #tpu.dot_dimension_numbers<[1], [0], [0], [1], [0, 0, 1, 1], [], []>} : vector<32x128xf32>, vector<128x32xf32>, vector<32x32xf32> -> vector<32x32xf32>
    %68 = tpu.reciprocal %67 : vector<32x32xf32> -> vector<32x32xf32>
    %69 = arith.mulf %66, %68 : vector<32x32xf32>
    %cst_35 = arith.constant dense<0.000000e+00> : vector<32x32xf32>
    %70 = tpu.matmul %69, %4, %cst_35 {dimension_numbers = #tpu.dot_dimension_numbers<[1], [0], [0], [1], [0, 0, 1, 1], [], []>} : vector<32x32xf32>, vector<32x32xf32>, vector<32x32xf32> -> vector<32x32xf32>
    %71 = vector.broadcast %7 : vector<1x32xf32> to vector<32x32xf32>
    %72 = arith.addf %70, %71 : vector<32x32xf32>
    %73 = arith.addf %0, %72 : vector<32x32xf32>
    %cst_36 = arith.constant dense<0.000000e+00> : vector<32xf32>
    %74 = vector.multi_reduction <add>, %73, %cst_36 [1] : vector<32x32xf32> to vector<32xf32>
    %75 = vector.shape_cast %74 : vector<32xf32> to vector<32x1xf32>
    %cst_37 = arith.constant 3.200000e+01 : f32
    %76 = vector.broadcast %cst_37 : f32 to vector<32x1xf32>
    %77 = arith.divf %75, %76 : vector<32x1xf32>
    %78 = vector.broadcast %77 : vector<32x1xf32> to vector<32x32xf32>
    %79 = arith.subf %73, %78 : vector<32x32xf32>
    %80 = arith.mulf %79, %79 : vector<32x32xf32>
    %cst_38 = arith.constant dense<0.000000e+00> : vector<32xf32>
    %81 = vector.multi_reduction <add>, %80, %cst_38 [1] : vector<32x32xf32> to vector<32xf32>
    %82 = vector.shape_cast %81 : vector<32xf32> to vector<32x1xf32>
    %cst_39 = arith.constant 3.200000e+01 : f32
    %83 = vector.broadcast %cst_39 : f32 to vector<32x1xf32>
    %84 = arith.divf %82, %83 : vector<32x1xf32>
    %85 = vector.broadcast %77 : vector<32x1xf32> to vector<32x32xf32>
    %86 = arith.subf %73, %85 : vector<32x32xf32>
    %cst_40 = arith.constant 9.99999974E-6 : f32
    %87 = vector.broadcast %cst_40 : f32 to vector<32x1xf32>
    %88 = arith.addf %84, %87 : vector<32x1xf32>
    %89 = math.rsqrt %88 : vector<32x1xf32>
    %90 = vector.broadcast %89 : vector<32x1xf32> to vector<32x32xf32>
    %91 = arith.mulf %86, %90 : vector<32x32xf32>
    %92 = vector.broadcast %11 : vector<1x32xf32> to vector<32x32xf32>
    %93 = arith.mulf %91, %92 : vector<32x32xf32>
    %94 = vector.broadcast %12 : vector<1x32xf32> to vector<32x32xf32>
    %95 = arith.addf %93, %94 : vector<32x32xf32>
    %cst_41 = arith.constant dense<0.000000e+00> : vector<32x64xf32>
    %96 = tpu.matmul %95, %2, %cst_41 {dimension_numbers = #tpu.dot_dimension_numbers<[1], [0], [0], [1], [0, 0, 1, 1], [], []>} : vector<32x32xf32>, vector<32x64xf32>, vector<32x64xf32> -> vector<32x64xf32>
    %97 = vector.broadcast %8 : vector<1x64xf32> to vector<32x64xf32>
    %98 = arith.addf %96, %97 : vector<32x64xf32>
    %cst_42 = arith.constant 0.000000e+00 : f32
    %99 = vector.broadcast %cst_42 : f32 to vector<32x64xf32>
    %100 = arith.maximumf %98, %99 : vector<32x64xf32>
    %cst_43 = arith.constant dense<0.000000e+00> : vector<32x32xf32>
    %101 = tpu.matmul %100, %3, %cst_43 {dimension_numbers = #tpu.dot_dimension_numbers<[1], [0], [0], [1], [0, 0, 1, 1], [], []>} : vector<32x64xf32>, vector<64x32xf32>, vector<32x32xf32> -> vector<32x32xf32>
    %102 = vector.broadcast %9 : vector<1x32xf32> to vector<32x32xf32>
    %103 = arith.addf %101, %102 : vector<32x32xf32>
    %104 = arith.addf %95, %103 : vector<32x32xf32>
    %cst_44 = arith.constant dense<0.000000e+00> : vector<32xf32>
    %105 = vector.multi_reduction <add>, %104, %cst_44 [1] : vector<32x32xf32> to vector<32xf32>
    %106 = vector.shape_cast %105 : vector<32xf32> to vector<32x1xf32>
    %cst_45 = arith.constant 3.200000e+01 : f32
    %107 = vector.broadcast %cst_45 : f32 to vector<32x1xf32>
    %108 = arith.divf %106, %107 : vector<32x1xf32>
    %109 = vector.broadcast %108 : vector<32x1xf32> to vector<32x32xf32>
    %110 = arith.subf %104, %109 : vector<32x32xf32>
    %111 = arith.mulf %110, %110 : vector<32x32xf32>
    %cst_46 = arith.constant dense<0.000000e+00> : vector<32xf32>
    %112 = vector.multi_reduction <add>, %111, %cst_46 [1] : vector<32x32xf32> to vector<32xf32>
    %113 = vector.shape_cast %112 : vector<32xf32> to vector<32x1xf32>
    %cst_47 = arith.constant 3.200000e+01 : f32
    %114 = vector.broadcast %cst_47 : f32 to vector<32x1xf32>
    %115 = arith.divf %113, %114 : vector<32x1xf32>
    %116 = vector.broadcast %108 : vector<32x1xf32> to vector<32x32xf32>
    %117 = arith.subf %104, %116 : vector<32x32xf32>
    %cst_48 = arith.constant 9.99999974E-6 : f32
    %118 = vector.broadcast %cst_48 : f32 to vector<32x1xf32>
    %119 = arith.addf %115, %118 : vector<32x1xf32>
    %120 = math.rsqrt %119 : vector<32x1xf32>
    %121 = vector.broadcast %120 : vector<32x1xf32> to vector<32x32xf32>
    %122 = arith.mulf %117, %121 : vector<32x32xf32>
    %123 = vector.broadcast %13 : vector<1x32xf32> to vector<32x32xf32>
    %124 = arith.mulf %122, %123 : vector<32x32xf32>
    %125 = vector.broadcast %14 : vector<1x32xf32> to vector<32x32xf32>
    %126 = arith.addf %124, %125 : vector<32x32xf32>
    %cst_49 = arith.constant dense<0.000000e+00> : vector<32x128xf32>
    %127 = tpu.matmul %126, %1, %cst_49 {dimension_numbers = #tpu.dot_dimension_numbers<[1], [0], [0], [1], [0, 0, 1, 1], [], []>} : vector<32x32xf32>, vector<32x128xf32>, vector<32x128xf32> -> vector<32x128xf32>
    %128 = vector.broadcast %6 : vector<1x128xf32> to vector<32x128xf32>
    %129 = arith.addf %127, %128 : vector<32x128xf32>
    %130 = vector.extract_strided_slice %129 {offsets = [0, 0], sizes = [32, 32], strides = [1, 1]} : vector<32x128xf32> to vector<32x32xf32>
    %cst_50 = arith.constant 0.353553385 : f32
    %131 = vector.broadcast %cst_50 : f32 to vector<32x32xf32>
    %132 = arith.mulf %130, %131 : vector<32x32xf32>
    %133 = vector.extract_strided_slice %129 {offsets = [0, 32], sizes = [32, 32], strides = [1, 1]} : vector<32x128xf32> to vector<32x32xf32>
    %134 = vector.extract_strided_slice %129 {offsets = [0, 64], sizes = [32, 32], strides = [1, 1]} : vector<32x128xf32> to vector<32x32xf32>
    %cst_51 = arith.constant dense<0.000000e+00> : vector<128x32xf32>
    %135 = tpu.matmul %15, %133, %cst_51 {dimension_numbers = #tpu.dot_dimension_numbers<[1], [0], [0], [1], [0, 0, 1, 1], [], []>} : vector<128x32xf32>, vector<32x32xf32>, vector<128x32xf32> -> vector<128x32xf32>
    %136 = arith.mulf %135, %16 : vector<128x32xf32>
    %cst_52 = arith.constant dense<0.000000e+00> : vector<128x32xf32>
    %137 = tpu.matmul %15, %134, %cst_52 {dimension_numbers = #tpu.dot_dimension_numbers<[1], [0], [0], [1], [0, 0, 1, 1], [], []>} : vector<128x32xf32>, vector<32x32xf32>, vector<128x32xf32> -> vector<128x32xf32>
    %138 = arith.mulf %137, %16 : vector<128x32xf32>
    %cst_53 = arith.constant dense<0.000000e+00> : vector<32x128xf32>
    %139 = tpu.matmul %132, %136, %cst_53 {dimension_numbers = #tpu.dot_dimension_numbers<[1], [1], [0], [0], [0, 0, 1, 0], [], []>} : vector<32x32xf32>, vector<128x32xf32>, vector<32x128xf32> -> vector<32x128xf32>
    %cst_54 = arith.constant 0.000000e+00 : f32
    %140 = vector.broadcast %cst_54 : f32 to vector<32x128xf32>
    %141 = vector.extract_strided_slice %139 {offsets = [0, 0], sizes = [32, 32], strides = [1, 1]} : vector<32x128xf32> to vector<32x32xf32>
    %cst_55 = arith.constant dense<0xFF800000> : vector<32xf32>
    %142 = vector.multi_reduction <maximumf>, %141, %cst_55 [1] : vector<32x32xf32> to vector<32xf32>
    %143 = vector.shape_cast %142 : vector<32xf32> to vector<32x1xf32>
    %144 = vector.extract_strided_slice %17 {offsets = [0, 0], sizes = [1, 128], strides = [1, 1]} : vector<4x128xf32> to vector<1x128xf32>
    %145 = vector.broadcast %143 : vector<32x1xf32> to vector<32x128xf32>
    %146 = vector.broadcast %144 : vector<1x128xf32> to vector<32x128xf32>
    %147 = arith.mulf %145, %146 : vector<32x128xf32>
    %148 = arith.addf %140, %147 : vector<32x128xf32>
    %149 = vector.extract_strided_slice %139 {offsets = [0, 32], sizes = [32, 32], strides = [1, 1]} : vector<32x128xf32> to vector<32x32xf32>
    %cst_56 = arith.constant dense<0xFF800000> : vector<32xf32>
    %150 = vector.multi_reduction <maximumf>, %149, %cst_56 [1] : vector<32x32xf32> to vector<32xf32>
    %151 = vector.shape_cast %150 : vector<32xf32> to vector<32x1xf32>
    %152 = vector.extract_strided_slice %17 {offsets = [1, 0], sizes = [1, 128], strides = [1, 1]} : vector<4x128xf32> to vector<1x128xf32>
    %153 = vector.broadcast %151 : vector<32x1xf32> to vector<32x128xf32>
    %154 = vector.broadcast %152 : vector<1x128xf32> to vector<32x128xf32>
    %155 = arith.mulf %153, %154 : vector<32x128xf32>
    %156 = arith.addf %148, %155 : vector<32x128xf32>
    %157 = vector.extract_strided_slice %139 {offsets = [0, 64], sizes = [32, 32], strides = [1, 1]} : vector<32x128xf32> to vector<32x32xf32>
    %cst_57 = arith.constant dense<0xFF800000> : vector<32xf32>
    %158 = vector.multi_reduction <maximumf>, %157, %cst_57 [1] : vector<32x32xf32> to vector<32xf32>
    %159 = vector.shape_cast %158 : vector<32xf32> to vector<32x1xf32>
    %160 = vector.extract_strided_slice %17 {offsets = [2, 0], sizes = [1, 128], strides = [1, 1]} : vector<4x128xf32> to vector<1x128xf32>
    %161 = vector.broadcast %159 : vector<32x1xf32> to vector<32x128xf32>
    %162 = vector.broadcast %160 : vector<1x128xf32> to vector<32x128xf32>
    %163 = arith.mulf %161, %162 : vector<32x128xf32>
    %164 = arith.addf %156, %163 : vector<32x128xf32>
    %165 = vector.extract_strided_slice %139 {offsets = [0, 96], sizes = [32, 32], strides = [1, 1]} : vector<32x128xf32> to vector<32x32xf32>
    %cst_58 = arith.constant dense<0xFF800000> : vector<32xf32>
    %166 = vector.multi_reduction <maximumf>, %165, %cst_58 [1] : vector<32x32xf32> to vector<32xf32>
    %167 = vector.shape_cast %166 : vector<32xf32> to vector<32x1xf32>
    %168 = vector.extract_strided_slice %17 {offsets = [3, 0], sizes = [1, 128], strides = [1, 1]} : vector<4x128xf32> to vector<1x128xf32>
    %169 = vector.broadcast %167 : vector<32x1xf32> to vector<32x128xf32>
    %170 = vector.broadcast %168 : vector<1x128xf32> to vector<32x128xf32>
    %171 = arith.mulf %169, %170 : vector<32x128xf32>
    %172 = arith.addf %164, %171 : vector<32x128xf32>
    %173 = arith.subf %139, %172 : vector<32x128xf32>
    %174 = math.exp %173 : vector<32x128xf32>
    %cst_59 = arith.constant dense<0.000000e+00> : vector<32x32xf32>
    %175 = tpu.matmul %174, %138, %cst_59 {dimension_numbers = #tpu.dot_dimension_numbers<[1], [0], [0], [1], [0, 0, 1, 1], [], []>} : vector<32x128xf32>, vector<128x32xf32>, vector<32x32xf32> -> vector<32x32xf32>
    %cst_60 = arith.constant dense<0.000000e+00> : vector<32x32xf32>
    %176 = tpu.matmul %174, %16, %cst_60 {dimension_numbers = #tpu.dot_dimension_numbers<[1], [0], [0], [1], [0, 0, 1, 1], [], []>} : vector<32x128xf32>, vector<128x32xf32>, vector<32x32xf32> -> vector<32x32xf32>
    %177 = tpu.reciprocal %176 : vector<32x32xf32> -> vector<32x32xf32>
    %178 = arith.mulf %175, %177 : vector<32x32xf32>
    %cst_61 = arith.constant dense<0.000000e+00> : vector<32x32xf32>
    %179 = tpu.matmul %178, %4, %cst_61 {dimension_numbers = #tpu.dot_dimension_numbers<[1], [0], [0], [1], [0, 0, 1, 1], [], []>} : vector<32x32xf32>, vector<32x32xf32>, vector<32x32xf32> -> vector<32x32xf32>
    %180 = vector.broadcast %7 : vector<1x32xf32> to vector<32x32xf32>
    %181 = arith.addf %179, %180 : vector<32x32xf32>
    %182 = arith.addf %126, %181 : vector<32x32xf32>
    %cst_62 = arith.constant dense<0.000000e+00> : vector<32xf32>
    %183 = vector.multi_reduction <add>, %182, %cst_62 [1] : vector<32x32xf32> to vector<32xf32>
    %184 = vector.shape_cast %183 : vector<32xf32> to vector<32x1xf32>
    %cst_63 = arith.constant 3.200000e+01 : f32
    %185 = vector.broadcast %cst_63 : f32 to vector<32x1xf32>
    %186 = arith.divf %184, %185 : vector<32x1xf32>
    %187 = vector.broadcast %186 : vector<32x1xf32> to vector<32x32xf32>
    %188 = arith.subf %182, %187 : vector<32x32xf32>
    %189 = arith.mulf %188, %188 : vector<32x32xf32>
    %cst_64 = arith.constant dense<0.000000e+00> : vector<32xf32>
    %190 = vector.multi_reduction <add>, %189, %cst_64 [1] : vector<32x32xf32> to vector<32xf32>
    %191 = vector.shape_cast %190 : vector<32xf32> to vector<32x1xf32>
    %cst_65 = arith.constant 3.200000e+01 : f32
    %192 = vector.broadcast %cst_65 : f32 to vector<32x1xf32>
    %193 = arith.divf %191, %192 : vector<32x1xf32>
    %194 = vector.broadcast %186 : vector<32x1xf32> to vector<32x32xf32>
    %195 = arith.subf %182, %194 : vector<32x32xf32>
    %cst_66 = arith.constant 9.99999974E-6 : f32
    %196 = vector.broadcast %cst_66 : f32 to vector<32x1xf32>
    %197 = arith.addf %193, %196 : vector<32x1xf32>
    %198 = math.rsqrt %197 : vector<32x1xf32>
    %199 = vector.broadcast %198 : vector<32x1xf32> to vector<32x32xf32>
    %200 = arith.mulf %195, %199 : vector<32x32xf32>
    %201 = vector.broadcast %11 : vector<1x32xf32> to vector<32x32xf32>
    %202 = arith.mulf %200, %201 : vector<32x32xf32>
    %203 = vector.broadcast %12 : vector<1x32xf32> to vector<32x32xf32>
    %204 = arith.addf %202, %203 : vector<32x32xf32>
    %cst_67 = arith.constant dense<0.000000e+00> : vector<32x64xf32>
    %205 = tpu.matmul %204, %2, %cst_67 {dimension_numbers = #tpu.dot_dimension_numbers<[1], [0], [0], [1], [0, 0, 1, 1], [], []>} : vector<32x32xf32>, vector<32x64xf32>, vector<32x64xf32> -> vector<32x64xf32>
    %206 = vector.broadcast %8 : vector<1x64xf32> to vector<32x64xf32>
    %207 = arith.addf %205, %206 : vector<32x64xf32>
    %cst_68 = arith.constant 0.000000e+00 : f32
    %208 = vector.broadcast %cst_68 : f32 to vector<32x64xf32>
    %209 = arith.maximumf %207, %208 : vector<32x64xf32>
    %cst_69 = arith.constant dense<0.000000e+00> : vector<32x32xf32>
    %210 = tpu.matmul %209, %3, %cst_69 {dimension_numbers = #tpu.dot_dimension_numbers<[1], [0], [0], [1], [0, 0, 1, 1], [], []>} : vector<32x64xf32>, vector<64x32xf32>, vector<32x32xf32> -> vector<32x32xf32>
    %211 = vector.broadcast %9 : vector<1x32xf32> to vector<32x32xf32>
    %212 = arith.addf %210, %211 : vector<32x32xf32>
    %213 = arith.addf %204, %212 : vector<32x32xf32>
    %cst_70 = arith.constant dense<0.000000e+00> : vector<32xf32>
    %214 = vector.multi_reduction <add>, %213, %cst_70 [1] : vector<32x32xf32> to vector<32xf32>
    %215 = vector.shape_cast %214 : vector<32xf32> to vector<32x1xf32>
    %cst_71 = arith.constant 3.200000e+01 : f32
    %216 = vector.broadcast %cst_71 : f32 to vector<32x1xf32>
    %217 = arith.divf %215, %216 : vector<32x1xf32>
    %218 = vector.broadcast %217 : vector<32x1xf32> to vector<32x32xf32>
    %219 = arith.subf %213, %218 : vector<32x32xf32>
    %220 = arith.mulf %219, %219 : vector<32x32xf32>
    %cst_72 = arith.constant dense<0.000000e+00> : vector<32xf32>
    %221 = vector.multi_reduction <add>, %220, %cst_72 [1] : vector<32x32xf32> to vector<32xf32>
    %222 = vector.shape_cast %221 : vector<32xf32> to vector<32x1xf32>
    %cst_73 = arith.constant 3.200000e+01 : f32
    %223 = vector.broadcast %cst_73 : f32 to vector<32x1xf32>
    %224 = arith.divf %222, %223 : vector<32x1xf32>
    %225 = vector.broadcast %217 : vector<32x1xf32> to vector<32x32xf32>
    %226 = arith.subf %213, %225 : vector<32x32xf32>
    %cst_74 = arith.constant 9.99999974E-6 : f32
    %227 = vector.broadcast %cst_74 : f32 to vector<32x1xf32>
    %228 = arith.addf %224, %227 : vector<32x1xf32>
    %229 = math.rsqrt %228 : vector<32x1xf32>
    %230 = vector.broadcast %229 : vector<32x1xf32> to vector<32x32xf32>
    %231 = arith.mulf %226, %230 : vector<32x32xf32>
    %232 = vector.broadcast %13 : vector<1x32xf32> to vector<32x32xf32>
    %233 = arith.mulf %231, %232 : vector<32x32xf32>
    %234 = vector.broadcast %14 : vector<1x32xf32> to vector<32x32xf32>
    %235 = arith.addf %233, %234 : vector<32x32xf32>
    %cst_75 = arith.constant dense<0.000000e+00> : vector<32x128xf32>
    %236 = tpu.matmul %235, %5, %cst_75 {dimension_numbers = #tpu.dot_dimension_numbers<[1], [0], [0], [1], [0, 0, 1, 1], [], []>} : vector<32x32xf32>, vector<32x128xf32>, vector<32x128xf32> -> vector<32x128xf32>
    %237 = vector.broadcast %10 : vector<1x128xf32> to vector<32x128xf32>
    %238 = arith.addf %236, %237 : vector<32x128xf32>
    %c0_76 = arith.constant 0 : index
    %c0_77 = arith.constant 0 : index
    %239 = vector.load %arg5[%c0_76, %c0_77] : memref<32x128xf32, #tpu.memory_space<vmem>>, vector<32x128xf32>
    tpu.vector_store %arg5[%c0_76, %c0_77], %238 {strides = array<i32>} : memref<32x128xf32, #tpu.memory_space<vmem>>, vector<32x128xf32>,
    return
  }
  func.func @transform_0(%arg0: i32) -> (i32, i32) {
    %c0_i32 = arith.constant 0 : i32
    %c0_i32_0 = arith.constant 0 : i32
    return %arg0, %c0_i32 : i32, i32
  }
  func.func @transform_1(%arg0: i32) -> (i32, i32) {
    %c0_i32 = arith.constant 0 : i32
    %c0_i32_0 = arith.constant 0 : i32
    %c0_i32_1 = arith.constant 0 : i32
    return %c0_i32, %c0_i32_0 : i32, i32
  }
  func.func @transform_2(%arg0: i32) -> (i32, i32) {
    %c0_i32 = arith.constant 0 : i32
    %c0_i32_0 = arith.constant 0 : i32
    %c0_i32_1 = arith.constant 0 : i32
    return %c0_i32, %c0_i32_0 : i32, i32
  }
  func.func @transform_3(%arg0: i32) -> (i32, i32) {
    %c0_i32 = arith.constant 0 : i32
    %c0_i32_0 = arith.constant 0 : i32
    %c0_i32_1 = arith.constant 0 : i32
    return %c0_i32, %c0_i32_0 : i32, i32
  }
  func.func @transform_4(%arg0: i32) -> (i32, i32) {
    %c0_i32 = arith.constant 0 : i32
    %c0_i32_0 = arith.constant 0 : i32
    return %arg0, %c0_i32 : i32, i32
  }
}

</mosaic_0001>

<llo_original>
// kernel: tpu_custom_call.1
$region0: #{tpu_custom_call.1}
  #allocation0 [shape = 'u32[]', space=smem, size = 0x4, offset = 0x4, fixed_abs, tag = 'smem constant byte address 0x4 - core index']
  #allocation1 [shape = 'u32[72,128]{1,0:T(1,128)}', space=vmem, size = 0x9000, scoped, tag = 'internal scratch']
  %s0 = inlined_call_operand.vmem [shape: f32[64,32], index: 0, kind: input, shape index: {}]
  %s1 = inlined_call_operand.hbm [shape: f32[160,128], index: 1, kind: input, shape index: {}]
  %s2 = inlined_call_operand.vmem [shape: f32[8,128], index: 2, kind: input, shape index: {}]
  %s3 = inlined_call_operand.hbm [shape: f32[136,128], index: 3, kind: input, shape index: {}]
  %s4 = inlined_call_operand.hbm [shape: f32[64,128], index: 4, kind: output, shape index: {}]
  %s5 = sld [smem:[#allocation0]]
  $region57: #{tpu_custom_call.1} parent=0
    _
  %s7 = ssub.s32 1, %s5
  %s8 = scalar_select 0, %s7, %s5
  $region1: #{tpu_custom_call.1} parent=0
    #allocation2 [shape = 'u8[81920]{0}', space=vmem, size = 0x14000, scoped, tag = 'input window, operand 1, single buffered']
    #allocation3 [shape = 's32[2]{0}', space=sflag, size = 0x8, scoped, tag = 'scoped memory for tpu_custom_call.1']
    #allocation4 [shape = 's32[2]{0}', space=sflag, size = 0x8, scoped, tag = 'scoped memory for tpu_custom_call.1']
    #allocation5 [shape = 'u8[69632]{0}', space=vmem, size = 0x11000, scoped, tag = 'input window, operand 3, single buffered']
    #allocation6 [shape = 's32[1]{0}', space=sflag, size = 0x4, scoped, tag = 'scoped memory for tpu_custom_call.1']
    #allocation7 [shape = 'u8[32768]{0}', space=vmem, size = 0x8000, scoped, tag = 'output window, operand 0']
    %9 = vsyncpa [#allocation3], 0
    %10 = vsyncpa [#allocation6], 0
    %11 = vsyncpa [#allocation4], 0
    %s12 = scalar_lea.sflag [#allocation4], 1
    %13 = vsyncpa %s12, 0
    loop: start=0, step=1, limit=4
    $region2: #{tpu_custom_call.1} parent=1 // loop_pre_header
      _
    $region3: #{tpu_custom_call.1} parent=1 // loop_header
      %s15 = sphi 0, %s19
      %p16 = scmp.ge.s32.totalorder %s15, 4
      %s25 = sphi 0, %s27
      %s28 = sphi 0, %s25
      %s29 = sphi 0, %s28
      %s45 = sphi 0, %s29
      %s49 = sphi 0, %s49
      %s51 = sphi 0, %s49
      %s52 = sphi 0, %s51
      %s66 = sphi 0, %s52
      %s70 = sphi 0, %s70
      %s72 = sphi 0, %s70
      %s73 = sphi 0, %s72
      %s87 = sphi 0, %s73
      %s91 = sphi 0, %s91
      %s93 = sphi 0, %s91
      %s94 = sphi 0, %s93
      %s108 = sphi 0, %s94
      %s114 = sphi 0, %s116
      %s117 = sphi 0, %s114
      %s118 = sphi 0, %s117
      %s134 = sphi 0, %s118
    $region4: #{tpu_custom_call.1} parent=1 // loop_header_branch
      %18 = sbr.rel (%p16) target = $region8
    $region5: #{tpu_custom_call.1} parent=1 // loop_body
      %s20 = ssub.s32 %s15, 1
      %s21 = ssub.s32 %s15, 2
      %s22 = sadd.s32 %s15, 1
      %s23 = ssub.s32 %s15, %s22
      %p24 = scmp.eq.s32.totalorder %s23, 0
      %s26 = sadd.s32 %s25, 1
      %s27 = scalar_select %p24, %s25, %s26
      %p30 = pneg %p24
      %p31 = scmp.eq.s32.totalorder %s15, 1
      %p32 = por %p30, %p31
      %p33 = scmp.ne.s32.totalorder %s25, %s28
      %p34 = scmp.eq.s32.totalorder %s15, 0
      %p35 = por %p33, %p34
      %p36 = scmp.ne.s32.totalorder %s25, %s28
      %p37 = scmp.eq.s32.totalorder %s20, 1
      %p38 = por %p36, %p37
      %p39 = scmp.ne.s32.totalorder %s28, %s29
      %p40 = scmp.eq.s32.totalorder %s20, 0
      %p41 = por %p39, %p40
      %p42 = scmp.ne.s32.totalorder %s28, %s29
      %p43 = scmp.eq.s32.totalorder %s21, 1
      %p44 = por %p42, %p43
      %p46 = scmp.ne.s32.totalorder %s29, %s45
      %p47 = scmp.eq.s32.totalorder %s21, 0
      %p48 = por %p46, %p47
      %s50 = sadd.s32 %s49, 1
      %p53 = scmp.eq.s32.totalorder %s15, 1
      %p54 = scmp.ne.s32.totalorder %s49, %s51
      %p55 = scmp.eq.s32.totalorder %s15, 0
      %p56 = por %p54, %p55
      %p57 = scmp.ne.s32.totalorder %s49, %s51
      %p58 = scmp.eq.s32.totalorder %s20, 1
      %p59 = por %p57, %p58
      %p60 = scmp.ne.s32.totalorder %s51, %s52
      %p61 = scmp.eq.s32.totalorder %s20, 0
      %p62 = por %p60, %p61
      %p63 = scmp.ne.s32.totalorder %s51, %s52
      %p64 = scmp.eq.s32.totalorder %s21, 1
      %p65 = por %p63, %p64
      %p67 = scmp.ne.s32.totalorder %s52, %s66
      %p68 = scmp.eq.s32.totalorder %s21, 0
      %p69 = por %p67, %p68
      %s71 = sadd.s32 %s70, 1
      %p74 = scmp.eq.s32.totalorder %s15, 1
      %p75 = scmp.ne.s32.totalorder %s70, %s72
      %p76 = scmp.eq.s32.totalorder %s15, 0
      %p77 = por %p75, %p76
      %p78 = scmp.ne.s32.totalorder %s70, %s72
      %p79 = scmp.eq.s32.totalorder %s20, 1
      %p80 = por %p78, %p79
      %p81 = scmp.ne.s32.totalorder %s72, %s73
      %p82 = scmp.eq.s32.totalorder %s20, 0
      %p83 = por %p81, %p82
      %p84 = scmp.ne.s32.totalorder %s72, %s73
      %p85 = scmp.eq.s32.totalorder %s21, 1
      %p86 = por %p84, %p85
      %p88 = scmp.ne.s32.totalorder %s73, %s87
      %p89 = scmp.eq.s32.totalorder %s21, 0
      %p90 = por %p88, %p89
      %s92 = sadd.s32 %s91, 1
      %p95 = scmp.eq.s32.totalorder %s15, 1
      %p96 = scmp.ne.s32.totalorder %s91, %s93
      %p97 = scmp.eq.s32.totalorder %s15, 0
      %p98 = por %p96, %p97
      %p99 = scmp.ne.s32.totalorder %s91, %s93
      %p100 = scmp.eq.s32.totalorder %s20, 1
      %p101 = por %p99, %p100
      %p102 = scmp.ne.s32.totalorder %s93, %s94
      %p103 = scmp.eq.s32.totalorder %s20, 0
      %p104 = por %p102, %p103
      %p105 = scmp.ne.s32.totalorder %s93, %s94
      %p106 = scmp.eq.s32.totalorder %s21, 1
      %p107 = por %p105, %p106
      %p109 = scmp.ne.s32.totalorder %s94, %s108
      %p110 = scmp.eq.s32.totalorder %s21, 0
      %p111 = por %p109, %p110
      %s112 = ssub.s32 %s15, %s22
      %p113 = scmp.eq.s32.totalorder %s112, 0
      %s115 = sadd.s32 %s114, 1
      %s116 = scalar_select %p113, %s114, %s115
      %p119 = pneg %p113
      %p120 = scmp.eq.s32.totalorder %s15, 1
      %p121 = por %p119, %p120
      %p122 = scmp.ne.s32.totalorder %s114, %s117
      %p123 = scmp.eq.s32.totalorder %s15, 0
      %p124 = por %p122, %p123
      %p125 = scmp.ne.s32.totalorder %s114, %s117
      %p126 = scmp.eq.s32.totalorder %s20, 1
      %p127 = por %p125, %p126
      %p128 = scmp.ne.s32.totalorder %s117, %s118
      %p129 = scmp.eq.s32.totalorder %s20, 0
      %p130 = por %p128, %p129
      %p131 = scmp.ne.s32.totalorder %s117, %s118
      %p132 = scmp.eq.s32.totalorder %s21, 1
      %p133 = por %p131, %p132
      %p135 = scmp.ne.s32.totalorder %s118, %s134
      %p136 = scmp.eq.s32.totalorder %s21, 0
      %p137 = por %p135, %p136
      %p138 = scmp.le.s32.totalorder 1, %s15
      %p139 = scmp.lt.s32.totalorder %s15, 3
      %p140 = pnand %p138, %p139
      %p141 = pneg %p140
      // Predicated region
      $region9: #{tpu_custom_call.1} parent=5 // pred_check
        _
      $region10: #{tpu_custom_call.1} parent=5 // pred_check_branch
        %143 = sbr.rel (%p140) target = $region12
      $region11: #{tpu_custom_call.1} parent=5 // pred_region
        %s144 = ssub.s32 %s15, 1
        // Predicated region
        $region13: #{tpu_custom_call.1} parent=11 // pred_check
          %p145 = pneg %p62
        $region14: #{tpu_custom_call.1} parent=11 // pred_check_branch
          %147 = sbr.rel (%p145) target = $region16
        $region15: #{tpu_custom_call.1} parent=11 // pred_region
          %149 = vsyncadd [#allocation3], 0
          %s150 = sshll.u32 %s1, 4
          %s151 = int_to_ptr.hbm [resolvable:$true] %s150
          %s152 = sshll.u32 [#allocation2], 4
          %s153 = int_to_ptr.vmem [resolvable:$true] %s152
          %158 = dma.hbm_to_vmem [thread:$0]  %s151, 2560, %s153, [#allocation3], 128, 128, 8
        $region16: #{tpu_custom_call.1} parent=11 // pred_fallthru
          _
        // Predicated region
        $region17: #{tpu_custom_call.1} parent=11 // pred_check
          %p159 = pneg %p83
        $region18: #{tpu_custom_call.1} parent=11 // pred_check_branch
          %161 = sbr.rel (%p159) target = $region20
        $region19: #{tpu_custom_call.1} parent=11 // pred_region
          _
        $region20: #{tpu_custom_call.1} parent=11 // pred_fallthru
          _
        // Predicated region
        $region21: #{tpu_custom_call.1} parent=11 // pred_check
          %p162 = pneg %p104
        $region22: #{tpu_custom_call.1} parent=11 // pred_check_branch
          %164 = sbr.rel (%p162) target = $region24
        $region23: #{tpu_custom_call.1} parent=11 // pred_region
          %166 = vsyncadd [#allocation6], 0
          %s167 = sshll.u32 %s3, 4
          %s168 = int_to_ptr.hbm [resolvable:$true] %s167
          %s169 = sshll.u32 [#allocation5], 4
          %s170 = int_to_ptr.vmem [resolvable:$true] %s169
          %175 = dma.hbm_to_vmem [thread:$0]  %s168, 2176, %s170, [#allocation6], 128, 128, 8
        $region24: #{tpu_custom_call.1} parent=11 // pred_fallthru
          _
      $region12: #{tpu_custom_call.1} parent=5 // pred_fallthru
        _
      %p176 = scmp.lt.s32.totalorder %s15, 2
      // Predicated region
      $region25: #{tpu_custom_call.1} parent=5 // pred_check
        %p177 = pneg %p176
      $region26: #{tpu_custom_call.1} parent=5 // pred_check_branch
        %179 = sbr.rel (%p177) target = $region28
      $region27: #{tpu_custom_call.1} parent=5 // pred_region
        // Predicated region
        $region29: #{tpu_custom_call.1} parent=27 // pred_check
          %p180 = pneg %p35
        $region30: #{tpu_custom_call.1} parent=27 // pred_check_branch
          %182 = sbr.rel (%p180) target = $region32
        $region31: #{tpu_custom_call.1} parent=27 // pred_region
          %s183 = smul.u32 4, %s15
          %p184 = scmp.lt.s32.totalorder %s183, 7
          %s185 = scalar_select %p184, %s183, 7
          %s186 = smul.addr %s185, 8
          %s187 = scalar_lea.vmem %s0, %s186
          %s188 = smul.u32 4, %s15
        $region32: #{tpu_custom_call.1} parent=27 // pred_fallthru
          _
      $region28: #{tpu_custom_call.1} parent=5 // pred_fallthru
        _
      %p189 = scmp.le.s32.totalorder 1, %s15
      %p190 = scmp.lt.s32.totalorder %s15, 3
      %p191 = pnand %p189, %p190
      %p192 = pneg %p191
      // Predicated region
      $region33: #{tpu_custom_call.1} parent=5 // pred_check
        _
      $region34: #{tpu_custom_call.1} parent=5 // pred_check_branch
        %194 = sbr.rel (%p191) target = $region36
      $region35: #{tpu_custom_call.1} parent=5 // pred_region
        %s195 = ssub.s32 %s15, 1
        // Predicated region
        $region37: #{tpu_custom_call.1} parent=35 // pred_check
          %p196 = pneg %p62
        $region38: #{tpu_custom_call.1} parent=35 // pred_check_branch
          %198 = sbr.rel (%p196) target = $region40
        $region39: #{tpu_custom_call.1} parent=35 // pred_region
          %200 = dma.done [#allocation3], 2560
        $region40: #{tpu_custom_call.1} parent=35 // pred_fallthru
          _
        // Predicated region
        $region41: #{tpu_custom_call.1} parent=35 // pred_check
          %p201 = pneg %p104
        $region42: #{tpu_custom_call.1} parent=35 // pred_check_branch
          %203 = sbr.rel (%p201) target = $region44
        $region43: #{tpu_custom_call.1} parent=35 // pred_region
          %205 = dma.done [#allocation6], 2176
        $region44: #{tpu_custom_call.1} parent=35 // pred_fallthru
          _
        %s206 = smul.u32 4, %s20
        %p207 = scmp.lt.s32.totalorder %s206, 7
        %s208 = scalar_select %p207, %s206, 7
        %s209 = smul.addr %s208, 8
        %s210 = scalar_lea.vmem %s0, %s209
        %p211 = pneg %p41
        %p212 = pneg %p38
        %p213 = pneg %p62
        %p214 = pneg %p59
        %p215 = pneg %p83
        %p216 = pneg %p80
        %p217 = pneg %p104
        %p218 = pneg %p101
        %p219 = pneg %p130
        %p220 = pneg %p127
        %s221 = sand.u32 %s117, 1
        %s222 = scalar_lea.sflag [#allocation4], %s221
        %s223 = sand.u32 %s117, 1
        %s224 = smul.addr %s223, 32
        %s225 = scalar_lea.vmem [#allocation7], %s224
        %s226 = smul.u32 4, %s20
        %p227 = scmp.lt.s32.totalorder %s226, 7
        %s228 = scalar_select %p227, %s226, 7
        %s229 = smul.addr %s228, 8
        %s230 = scalar_lea.vmem %s0, %s229
        %s231 = smul.u32 4, %s20
        %s232 = smul.u32 4, %s20
        %v233 = vld [vmem:[%s230] sm:$0xff]
        %v234 = vld [vmem:[%s230 + $0x8] sm:$0xff]
        %v235 = vld [vmem:[%s230 + $0x10] sm:$0xff]
        %v236 = vld [vmem:[%s230 + $0x18] sm:$0xff]
        %v237 = vld [vmem:[#allocation2] sm:$0xff]
        %v238 = vld [vmem:[#allocation2 + $0x8] sm:$0xff]
        %v239 = vld [vmem:[#allocation2 + $0x10] sm:$0xff]
        %v240 = vld [vmem:[#allocation2 + $0x18] sm:$0xff]
        %v241 = vld [vmem:[#allocation2 + $0x20] sm:$0xff]
        %v242 = vld [vmem:[#allocation2 + $0x28] sm:$0xff]
        %v243 = vld [vmem:[#allocation2 + $0x30] sm:$0xff]
        %v244 = vld [vmem:[#allocation2 + $0x38] sm:$0xff]
        %v245 = vld [vmem:[#allocation2 + $0x40] sm:$0xff]
        %v246 = vld [vmem:[#allocation2 + $0x48] sm:$0xff]
        %v247 = vld [vmem:[#allocation2 + $0x50] sm:$0xff]
        %v248 = vld [vmem:[#allocation2 + $0x58] sm:$0xff]
        %v249 = vld [vmem:[#allocation2 + $0x60] sm:$0xff]
        %v250 = vld [vmem:[#allocation2 + $0x68] sm:$0xff]
        %v251 = vld [vmem:[#allocation2 + $0x70] sm:$0xff]
        %v252 = vld [vmem:[#allocation2 + $0x78] sm:$0xff]
        %v253 = vld [vmem:[#allocation2 + $0x80] sm:$0xff]
        %v254 = vld [vmem:[#allocation2 + $0x88] sm:$0xff]
        %v255 = vld [vmem:[#allocation2 + $0x90] sm:$0xff]
        %v256 = vld [vmem:[#allocation2 + $0x98] sm:$0xff]
        %v257 = vld [vmem:[%s2] sm:$0x1]
        %v258 = vld [vmem:[%s2 + $0x1] sm:$0x1]
        %v259 = vld [vmem:[%s2 + $0x2] sm:$0x1]
        %v260 = vld [vmem:[%s2 + $0x3] sm:$0x1]
        %v261 = vld [vmem:[%s2 + $0x4] sm:$0x1]
        %v262 = vld [vmem:[%s2 + $0x5] sm:$0x1]
        %v263 = vld [vmem:[%s2 + $0x6] sm:$0x1]
        %v264 = vld [vmem:[%s2 + $0x7] sm:$0x1]
        %v265 = vld [vmem:[#allocation5] sm:$0xff]
        %v266 = vld [vmem:[#allocation5 + $0x8] sm:$0xff]
        %v267 = vld [vmem:[#allocation5 + $0x10] sm:$0xff]
        %v268 = vld [vmem:[#allocation5 + $0x18] sm:$0xff]
        %v269 = vld [vmem:[#allocation5 + $0x20] sm:$0xff]
        %v270 = vld [vmem:[#allocation5 + $0x28] sm:$0xff]
        %v271 = vld [vmem:[#allocation5 + $0x30] sm:$0xff]
        %v272 = vld [vmem:[#allocation5 + $0x38] sm:$0xff]
        %v273 = vld [vmem:[#allocation5 + $0x40] sm:$0xff]
        %v274 = vld [vmem:[#allocation5 + $0x48] sm:$0xff]
        %v275 = vld [vmem:[#allocation5 + $0x50] sm:$0xff]
        %v276 = vld [vmem:[#allocation5 + $0x58] sm:$0xff]
        %v277 = vld [vmem:[#allocation5 + $0x60] sm:$0xff]
        %v278 = vld [vmem:[#allocation5 + $0x68] sm:$0xff]
        %v279 = vld [vmem:[#allocation5 + $0x70] sm:$0xff]
        %v280 = vld [vmem:[#allocation5 + $0x78] sm:$0xff]
        %v281 = vld [vmem:[#allocation5 + $0x80] sm:$0xf]
        %v282 = vperm.slane %v257, 0
        %vm283 = vcmask 261120
        %v285 = vsel %vm283, %v233, 0
        %v288 = vsel %vm283, %v234, 0
        %v291 = vsel %vm283, %v235, 0
        %v294 = vsel %vm283, %v236, 0
        %296 = vmatpush.msra.mxu0 0.0
        %297 = vmatpush.msra.mxu0 0.0
        %298 = vmatpush.msra.mxu0 0.0
        %299 = vmatpush.msra.mxu0 0.0
        %300 = vmatpush.msra.mxu0 0.0
        %301 = vmatpush.msra.mxu0 0.0
        %302 = vmatpush.msra.mxu0 0.0
        %303 = vmatpush.msra.mxu0 0.0
        %304 = vmatpush.msra.mxu0 0.0
        %305 = vmatpush.msra.mxu0 0.0
        %306 = vmatpush.msra.mxu0 0.0
        %307 = vmatpush.msra.mxu0 0.0
        %308 = vmatpush.msra.mxu0 %v240
        %309 = vmatpush.msra.mxu0 %v239
        %310 = vmatpush.msra.mxu0 %v238
        %311 = vmatpush.msra.mxu0 %v237
        %312 = vmatmul.f32.gmra.mxu0 %v285
        %v313 = vpop.f32.mrf.mxu0
        %v314 = vadd.f32 %v282, %v313
        %315 = vmatmul.f32.gmra.mxu0 %v288
        %v316 = vpop.f32.mrf.mxu0
        %v317 = vadd.f32 %v282, %v316
        %318 = vmatmul.f32.gmra.mxu0 %v291
        %v319 = vpop.f32.mrf.mxu0
        %v320 = vadd.f32 %v282, %v319
        %321 = vmatmul.f32.gmra.mxu0 %v294
        %v322 = vpop.f32.mrf.mxu0
        %v323 = vadd.f32 %v282, %v322
        %324 = vdwg.mxu0
        %v325 = vmul.f32 %v314, 0.35355338
        %v326 = vmul.f32 %v317, 0.35355338
        %v327 = vmul.f32 %v320, 0.35355338
        %v328 = vmul.f32 %v323, 0.35355338
        %333 = vrot.lane.b32.xlu0 %v314, 96
        %v334 = vpop.permute.xlu0 %333
        %335 = vrot.lane.b32.xlu0 %v317, 96
        %v336 = vpop.permute.xlu0 %335
        %337 = vrot.lane.b32.xlu0 %v320, 96
        %v338 = vpop.permute.xlu0 %337
        %339 = vrot.lane.b32.xlu0 %v323, 96
        %v340 = vpop.permute.xlu0 %339
        %v346 = vsel %vm283, %v265, 0
        %v349 = vsel %vm283, %v266, 0
        %v352 = vsel %vm283, %v267, 0
        %v355 = vsel %vm283, %v268, 0
        %v358 = vsel %vm283, %v269, 0
        %v361 = vsel %vm283, %v270, 0
        %v364 = vsel %vm283, %v271, 0
        %v367 = vsel %vm283, %v272, 0
        %v370 = vsel %vm283, %v273, 0
        %v373 = vsel %vm283, %v274, 0
        %v376 = vsel %vm283, %v275, 0
        %v379 = vsel %vm283, %v276, 0
        %v382 = vsel %vm283, %v277, 0
        %v385 = vsel %vm283, %v278, 0
        %v388 = vsel %vm283, %v279, 0
        %v391 = vsel %vm283, %v280, 0
        %393 = vmatpush.msra.mxu0 0.0
        %394 = vmatpush.msra.mxu0 0.0
        %395 = vmatpush.msra.mxu0 0.0
        %396 = vmatpush.msra.mxu0 0.0
        %397 = vmatpush.msra.mxu0 0.0
        %398 = vmatpush.msra.mxu0 0.0
        %399 = vmatpush.msra.mxu0 0.0
        %400 = vmatpush.msra.mxu0 0.0
        %401 = vmatpush.msra.mxu0 0.0
        %402 = vmatpush.msra.mxu0 0.0
        %403 = vmatpush.msra.mxu0 0.0
        %404 = vmatpush.msra.mxu0 0.0
        %405 = vmatpush.msra.mxu0 %v340
        %406 = vmatpush.msra.mxu0 %v338
        %407 = vmatpush.msra.mxu0 %v336
        %408 = vmatpush.msra.mxu0 %v334
        %409 = vmatmul.f32.gmra.mxu0 %v346
        %v410 = vpop.f32.mrf.mxu0
        %v411 = vadd.f32 0.0, %v410
        %412 = vmatmul.f32.gmra.mxu0 %v349
        %v413 = vpop.f32.mrf.mxu0
        %v414 = vadd.f32 0.0, %v413
        %415 = vmatmul.f32.gmra.mxu0 %v352
        %v416 = vpop.f32.mrf.mxu0
        %v417 = vadd.f32 0.0, %v416
        %418 = vmatmul.f32.gmra.mxu0 %v355
        %v419 = vpop.f32.mrf.mxu0
        %v420 = vadd.f32 0.0, %v419
        %421 = vmatmul.f32.gmra.mxu0 %v358
        %v422 = vpop.f32.mrf.mxu0
        %v423 = vadd.f32 0.0, %v422
        %424 = vmatmul.f32.gmra.mxu0 %v361
        %v425 = vpop.f32.mrf.mxu0
        %v426 = vadd.f32 0.0, %v425
        %427 = vmatmul.f32.gmra.mxu0 %v364
        %v428 = vpop.f32.mrf.mxu0
        %v429 = vadd.f32 0.0, %v428
        %430 = vmatmul.f32.gmra.mxu0 %v367
        %v431 = vpop.f32.mrf.mxu0
        %v432 = vadd.f32 0.0, %v431
        %433 = vmatmul.f32.gmra.mxu0 %v370
        %v434 = vpop.f32.mrf.mxu0
        %v435 = vadd.f32 0.0, %v434
        %436 = vmatmul.f32.gmra.mxu0 %v373
        %v437 = vpop.f32.mrf.mxu0
        %v438 = vadd.f32 0.0, %v437
        %439 = vmatmul.f32.gmra.mxu0 %v376
        %v440 = vpop.f32.mrf.mxu0
        %v441 = vadd.f32 0.0, %v440
        %442 = vmatmul.f32.gmra.mxu0 %v379
        %v443 = vpop.f32.mrf.mxu0
        %v444 = vadd.f32 0.0, %v443
        %445 = vmatmul.f32.gmra.mxu0 %v382
        %v446 = vpop.f32.mrf.mxu0
        %v447 = vadd.f32 0.0, %v446
        %448 = vmatmul.f32.gmra.mxu0 %v385
        %v449 = vpop.f32.mrf.mxu0
        %v450 = vadd.f32 0.0, %v449
        %451 = vmatmul.f32.gmra.mxu0 %v388
        %v452 = vpop.f32.mrf.mxu0
        %v453 = vadd.f32 0.0, %v452
        %454 = vmatmul.f32.gmra.mxu0 %v391
        %v455 = vpop.f32.mrf.mxu0
        %v456 = vadd.f32 0.0, %v455
        %457 = vdwg.mxu0
        %458 = vrot.lane.b32.xlu0 %v265, 96
        %v459 = vpop.permute.xlu0 %458
        %460 = vrot.lane.b32.xlu0 %v266, 96
        %v461 = vpop.permute.xlu0 %460
        %462 = vrot.lane.b32.xlu0 %v267, 96
        %v463 = vpop.permute.xlu0 %462
        %464 = vrot.lane.b32.xlu0 %v268, 96
        %v465 = vpop.permute.xlu0 %464
        %466 = vrot.lane.b32.xlu0 %v269, 96
        %v467 = vpop.permute.xlu0 %466
        %468 = vrot.lane.b32.xlu0 %v270, 96
        %v469 = vpop.permute.xlu0 %468
        %470 = vrot.lane.b32.xlu0 %v271, 96
        %v471 = vpop.permute.xlu0 %470
        %472 = vrot.lane.b32.xlu0 %v272, 96
        %v473 = vpop.permute.xlu0 %472
        %474 = vrot.lane.b32.xlu0 %v273, 96
        %v475 = vpop.permute.xlu0 %474
        %476 = vrot.lane.b32.xlu0 %v274, 96
        %v477 = vpop.permute.xlu0 %476
        %478 = vrot.lane.b32.xlu0 %v275, 96
        %v479 = vpop.permute.xlu0 %478
        %480 = vrot.lane.b32.xlu0 %v276, 96
        %v481 = vpop.permute.xlu0 %480
        %482 = vrot.lane.b32.xlu0 %v277, 96
        %v483 = vpop.permute.xlu0 %482
        %484 = vrot.lane.b32.xlu0 %v278, 96
        %v485 = vpop.permute.xlu0 %484
        %486 = vrot.lane.b32.xlu0 %v279, 96
        %v487 = vpop.permute.xlu0 %486
        %488 = vrot.lane.b32.xlu0 %v280, 96
        %v489 = vpop.permute.xlu0 %488
        %v506 = vmul.f32 %v411, %v459
        %v507 = vmul.f32 %v414, %v461
        %v508 = vmul.f32 %v417, %v463
        %v509 = vmul.f32 %v420, %v465
        %v510 = vmul.f32 %v423, %v467
        %v511 = vmul.f32 %v426, %v469
        %v512 = vmul.f32 %v429, %v471
        %v513 = vmul.f32 %v432, %v473
        %v514 = vmul.f32 %v435, %v475
        %v515 = vmul.f32 %v438, %v477
        %v516 = vmul.f32 %v441, %v479
        %v517 = vmul.f32 %v444, %v481
        %v518 = vmul.f32 %v447, %v483
        %v519 = vmul.f32 %v450, %v485
        %v520 = vmul.f32 %v453, %v487
        %v521 = vmul.f32 %v456, %v489
        %522 = vrot.lane.b32.xlu0 %v314, 64
        %v523 = vpop.permute.xlu0 %522
        %524 = vrot.lane.b32.xlu0 %v317, 64
        %v525 = vpop.permute.xlu0 %524
        %526 = vrot.lane.b32.xlu0 %v320, 64
        %v527 = vpop.permute.xlu0 %526
        %528 = vrot.lane.b32.xlu0 %v323, 64
        %v529 = vpop.permute.xlu0 %528
        %534 = vmatpush.msra.mxu0 0.0
        %535 = vmatpush.msra.mxu0 0.0
        %536 = vmatpush.msra.mxu0 0.0
        %537 = vmatpush.msra.mxu0 0.0
        %538 = vmatpush.msra.mxu0 0.0
        %539 = vmatpush.msra.mxu0 0.0
        %540 = vmatpush.msra.mxu0 0.0
        %541 = vmatpush.msra.mxu0 0.0
        %542 = vmatpush.msra.mxu0 0.0
        %543 = vmatpush.msra.mxu0 0.0
        %544 = vmatpush.msra.mxu0 0.0
        %545 = vmatpush.msra.mxu0 0.0
        %546 = vmatpush.msra.mxu0 %v529
        %547 = vmatpush.msra.mxu0 %v527
        %548 = vmatpush.msra.mxu0 %v525
        %549 = vmatpush.msra.mxu0 %v523
        %550 = vmatmul.f32.gmra.mxu0 %v346
        %v551 = vpop.f32.mrf.mxu0
        %v552 = vadd.f32 0.0, %v551
        %553 = vmatmul.f32.gmra.mxu0 %v349
        %v554 = vpop.f32.mrf.mxu0
        %v555 = vadd.f32 0.0, %v554
        %556 = vmatmul.f32.gmra.mxu0 %v352
        %v557 = vpop.f32.mrf.mxu0
        %v558 = vadd.f32 0.0, %v557
        %559 = vmatmul.f32.gmra.mxu0 %v355
        %v560 = vpop.f32.mrf.mxu0
        %v561 = vadd.f32 0.0, %v560
        %562 = vmatmul.f32.gmra.mxu0 %v358
        %v563 = vpop.f32.mrf.mxu0
        %v564 = vadd.f32 0.0, %v563
        %565 = vmatmul.f32.gmra.mxu0 %v361
        %v566 = vpop.f32.mrf.mxu0
        %v567 = vadd.f32 0.0, %v566
        %568 = vmatmul.f32.gmra.mxu0 %v364
        %v569 = vpop.f32.mrf.mxu0
        %v570 = vadd.f32 0.0, %v569
        %571 = vmatmul.f32.gmra.mxu0 %v367
        %v572 = vpop.f32.mrf.mxu0
        %v573 = vadd.f32 0.0, %v572
        %574 = vmatmul.f32.gmra.mxu0 %v370
        %v575 = vpop.f32.mrf.mxu0
        %v576 = vadd.f32 0.0, %v575
        %577 = vmatmul.f32.gmra.mxu0 %v373
        %v578 = vpop.f32.mrf.mxu0
        %v579 = vadd.f32 0.0, %v578
        %580 = vmatmul.f32.gmra.mxu0 %v376
        %v581 = vpop.f32.mrf.mxu0
        %v582 = vadd.f32 0.0, %v581
        %583 = vmatmul.f32.gmra.mxu0 %v379
        %v584 = vpop.f32.mrf.mxu0
        %v585 = vadd.f32 0.0, %v584
        %586 = vmatmul.f32.gmra.mxu0 %v382
        %v587 = vpop.f32.mrf.mxu0
        %v588 = vadd.f32 0.0, %v587
        %589 = vmatmul.f32.gmra.mxu0 %v385
        %v590 = vpop.f32.mrf.mxu0
        %v591 = vadd.f32 0.0, %v590
        %592 = vmatmul.f32.gmra.mxu0 %v388
        %v593 = vpop.f32.mrf.mxu0
        %v594 = vadd.f32 0.0, %v593
        %595 = vmatmul.f32.gmra.mxu0 %v391
        %v596 = vpop.f32.mrf.mxu0
        %v597 = vadd.f32 0.0, %v596
        %598 = vdwg.mxu0
        %v599 = vmul.f32 %v552, %v459
        %v600 = vmul.f32 %v555, %v461
        %v601 = vmul.f32 %v558, %v463
        %v602 = vmul.f32 %v561, %v465
        %v603 = vmul.f32 %v564, %v467
        %v604 = vmul.f32 %v567, %v469
        %v605 = vmul.f32 %v570, %v471
        %v606 = vmul.f32 %v573, %v473
        %v607 = vmul.f32 %v576, %v475
        %v608 = vmul.f32 %v579, %v477
        %v609 = vmul.f32 %v582, %v479
        %v610 = vmul.f32 %v585, %v481
        %v611 = vmul.f32 %v588, %v483
        %v612 = vmul.f32 %v591, %v485
        %v613 = vmul.f32 %v594, %v487
        %v614 = vmul.f32 %v597, %v489
        %v616 = vsel %vm283, %v325, 0
        %v619 = vsel %vm283, %v326, 0
        %v622 = vsel %vm283, %v327, 0
        %v625 = vsel %vm283, %v328, 0
        %v628 = vsel %vm283, %v506, 0
        %v631 = vsel %vm283, %v507, 0
        %v634 = vsel %vm283, %v508, 0
        %v637 = vsel %vm283, %v509, 0
        %v640 = vsel %vm283, %v510, 0
        %v643 = vsel %vm283, %v511, 0
        %v646 = vsel %vm283, %v512, 0
        %v649 = vsel %vm283, %v513, 0
        %v652 = vsel %vm283, %v514, 0
        %v655 = vsel %vm283, %v515, 0
        %v658 = vsel %vm283, %v516, 0
        %v661 = vsel %vm283, %v517, 0
        %v664 = vsel %vm283, %v518, 0
        %v667 = vsel %vm283, %v519, 0
        %v670 = vsel %vm283, %v520, 0
        %v673 = vsel %vm283, %v521, 0
        %675 = vmatpush.xpose.msra.mxu0 %v673
        %676 = vmatpush.xpose.msra.mxu0 %v670
        %677 = vmatpush.xpose.msra.mxu0 %v667
        %678 = vmatpush.xpose.msra.mxu0 %v664
        %679 = vmatpush.xpose.msra.mxu0 %v661
        %680 = vmatpush.xpose.msra.mxu0 %v658
        %681 = vmatpush.xpose.msra.mxu0 %v655
        %682 = vmatpush.xpose.msra.mxu0 %v652
        %683 = vmatpush.xpose.msra.mxu0 %v649
        %684 = vmatpush.xpose.msra.mxu0 %v646
        %685 = vmatpush.xpose.msra.mxu0 %v643
        %686 = vmatpush.xpose.msra.mxu0 %v640
        %687 = vmatpush.xpose.msra.mxu0 %v637
        %688 = vmatpush.xpose.msra.mxu0 %v634
        %689 = vmatpush.xpose.msra.mxu0 %v631
        %690 = vmatpush.xpose.msra.mxu0 %v628
        %691 = vmatmul.f32.gmra.mxu0 %v616
        %v692 = vpop.f32.mrf.mxu0
        %v693 = vadd.f32 0.0, %v692
        %694 = vmatmul.f32.gmra.mxu0 %v619
        %v695 = vpop.f32.mrf.mxu0
        %v696 = vadd.f32 0.0, %v695
        %697 = vmatmul.f32.gmra.mxu0 %v622
        %v698 = vpop.f32.mrf.mxu0
        %v699 = vadd.f32 0.0, %v698
        %700 = vmatmul.f32.gmra.mxu0 %v625
        %v701 = vpop.f32.mrf.mxu0
        %v702 = vadd.f32 0.0, %v701
        %703 = vdwg.mxu0
        %v704 = vsel %vm283, %v693, -inf
        %705 = vmax.xlane.f32.xlu0 %v704
        %v706 = vpop.xlane.xlu0 %705
        %v707 = vsel %vm283, %v696, -inf
        %708 = vmax.xlane.f32.xlu0 %v707
        %v709 = vpop.xlane.xlu0 %708
        %v710 = vsel %vm283, %v699, -inf
        %711 = vmax.xlane.f32.xlu0 %v710
        %v712 = vpop.xlane.xlu0 %711
        %v713 = vsel %vm283, %v702, -inf
        %714 = vmax.xlane.f32.xlu0 %v713
        %v715 = vpop.xlane.xlu0 %714
        %v716 = vperm.slane %v281, 0
        %v717 = vmul.f32 %v706, %v716
        %v718 = vmul.f32 %v709, %v716
        %v719 = vmul.f32 %v712, %v716
        %v720 = vmul.f32 %v715, %v716
        %v721 = vadd.f32 %v717, 0.0
        %v722 = vadd.f32 %v718, 0.0
        %v723 = vadd.f32 %v719, 0.0
        %v724 = vadd.f32 %v720, 0.0
        %vm725 = vcmask 523520
        %v726 = vsel %vm725, %v693, -inf
        %727 = vmax.xlane.f32.xlu0 %v726
        %v728 = vpop.xlane.xlu0 %727
        %v729 = vsel %vm725, %v696, -inf
        %730 = vmax.xlane.f32.xlu0 %v729
        %v731 = vpop.xlane.xlu0 %730
        %v732 = vsel %vm725, %v699, -inf
        %733 = vmax.xlane.f32.xlu0 %v732
        %v734 = vpop.xlane.xlu0 %733
        %v735 = vsel %vm725, %v702, -inf
        %736 = vmax.xlane.f32.xlu0 %v735
        %v737 = vpop.xlane.xlu0 %736
        %v738 = vperm.slane %v281, 1
        %v739 = vmul.f32 %v728, %v738
        %v740 = vmul.f32 %v731, %v738
        %v741 = vmul.f32 %v734, %v738
        %v742 = vmul.f32 %v737, %v738
        %v743 = vadd.f32 %v721, %v739
        %v744 = vadd.f32 %v722, %v740
        %v745 = vadd.f32 %v723, %v741
        %v746 = vadd.f32 %v724, %v742
        %vm747 = vcmask 785920
        %v748 = vsel %vm747, %v693, -inf
        %749 = vmax.xlane.f32.xlu0 %v748
        %v750 = vpop.xlane.xlu0 %749
        %v751 = vsel %vm747, %v696, -inf
        %752 = vmax.xlane.f32.xlu0 %v751
        %v753 = vpop.xlane.xlu0 %752
        %v754 = vsel %vm747, %v699, -inf
        %755 = vmax.xlane.f32.xlu0 %v754
        %v756 = vpop.xlane.xlu0 %755
        %v757 = vsel %vm747, %v702, -inf
        %758 = vmax.xlane.f32.xlu0 %v757
        %v759 = vpop.xlane.xlu0 %758
        %v760 = vperm.slane %v281, 2
        %v761 = vmul.f32 %v750, %v760
        %v762 = vmul.f32 %v753, %v760
        %v763 = vmul.f32 %v756, %v760
        %v764 = vmul.f32 %v759, %v760
        %v765 = vadd.f32 %v743, %v761
        %v766 = vadd.f32 %v744, %v762
        %v767 = vadd.f32 %v745, %v763
        %v768 = vadd.f32 %v746, %v764
        %vm769 = vcmask 1048320
        %v770 = vsel %vm769, %v693, -inf
        %771 = vmax.xlane.f32.xlu0 %v770
        %v772 = vpop.xlane.xlu0 %771
        %v773 = vsel %vm769, %v696, -inf
        %774 = vmax.xlane.f32.xlu0 %v773
        %v775 = vpop.xlane.xlu0 %774
        %v776 = vsel %vm769, %v699, -inf
        %777 = vmax.xlane.f32.xlu0 %v776
        %v778 = vpop.xlane.xlu0 %777
        %v779 = vsel %vm769, %v702, -inf
        %780 = vmax.xlane.f32.xlu0 %v779
        %v781 = vpop.xlane.xlu0 %780
        %v782 = vperm.slane %v281, 3
        %v783 = vmul.f32 %v772, %v782
        %v784 = vmul.f32 %v775, %v782
        %v785 = vmul.f32 %v778, %v782
        %v786 = vmul.f32 %v781, %v782
        %v787 = vadd.f32 %v765, %v783
        %v788 = vadd.f32 %v766, %v784
        %v789 = vadd.f32 %v767, %v785
        %v790 = vadd.f32 %v768, %v786
        %v791 = vsub.f32 %v693, %v787
        %v792 = vsub.f32 %v696, %v788
        %v793 = vsub.f32 %v699, %v789
        %v794 = vsub.f32 %v702, %v790
        %v795 = vmul.f32 %v791, 1.442695
        %v796 = vpow.pop %v795
        %v797 = vmul.f32 %v792, 1.442695
        %v798 = vpow.pop %v797
        %v799 = vmul.f32 %v793, 1.442695
        %v800 = vpow.pop %v799
        %v801 = vmul.f32 %v794, 1.442695
        %v802 = vpow.pop %v801
        %803 = vmatpush.msra.mxu0 %v614
        %804 = vmatpush.msra.mxu0 %v613
        %805 = vmatpush.msra.mxu0 %v612
        %806 = vmatpush.msra.mxu0 %v611
        %807 = vmatpush.msra.mxu0 %v610
        %808 = vmatpush.msra.mxu0 %v609
        %809 = vmatpush.msra.mxu0 %v608
        %810 = vmatpush.msra.mxu0 %v607
        %811 = vmatpush.msra.mxu0 %v606
        %812 = vmatpush.msra.mxu0 %v605
        %813 = vmatpush.msra.mxu0 %v604
        %814 = vmatpush.msra.mxu0 %v603
        %815 = vmatpush.msra.mxu0 %v602
        %816 = vmatpush.msra.mxu0 %v601
        %817 = vmatpush.msra.mxu0 %v600
        %818 = vmatpush.msra.mxu0 %v599
        %819 = vmatmul.f32.gmra.mxu0 %v796
        %v820 = vpop.f32.mrf.mxu0
        %v821 = vadd.f32 0.0, %v820
        %822 = vmatmul.f32.gmra.mxu0 %v798
        %v823 = vpop.f32.mrf.mxu0
        %v824 = vadd.f32 0.0, %v823
        %825 = vmatmul.f32.gmra.mxu0 %v800
        %v826 = vpop.f32.mrf.mxu0
        %v827 = vadd.f32 0.0, %v826
        %828 = vmatmul.f32.gmra.mxu0 %v802
        %v829 = vpop.f32.mrf.mxu0
        %v830 = vadd.f32 0.0, %v829
        %831 = vdwg.mxu0
        %832 = vmatpush.msra.mxu0 %v489
        %833 = vmatpush.msra.mxu0 %v487
        %834 = vmatpush.msra.mxu0 %v485
        %835 = vmatpush.msra.mxu0 %v483
        %836 = vmatpush.msra.mxu0 %v481
        %837 = vmatpush.msra.mxu0 %v479
        %838 = vmatpush.msra.mxu0 %v477
        %839 = vmatpush.msra.mxu0 %v475
        %840 = vmatpush.msra.mxu0 %v473
        %841 = vmatpush.msra.mxu0 %v471
        %842 = vmatpush.msra.mxu0 %v469
        %843 = vmatpush.msra.mxu0 %v467
        %844 = vmatpush.msra.mxu0 %v465
        %845 = vmatpush.msra.mxu0 %v463
        %846 = vmatpush.msra.mxu0 %v461
        %847 = vmatpush.msra.mxu0 %v459
        %848 = vmatmul.f32.gmra.mxu0 %v796
        %v849 = vpop.f32.mrf.mxu0
        %v850 = vadd.f32 0.0, %v849
        %851 = vmatmul.f32.gmra.mxu0 %v798
        %v852 = vpop.f32.mrf.mxu0
        %v853 = vadd.f32 0.0, %v852
        %854 = vmatmul.f32.gmra.mxu0 %v800
        %v855 = vpop.f32.mrf.mxu0
        %v856 = vadd.f32 0.0, %v855
        %857 = vmatmul.f32.gmra.mxu0 %v802
        %v858 = vpop.f32.mrf.mxu0
        %v859 = vadd.f32 0.0, %v858
        %860 = vdwg.mxu0
        %v861 = vrcp.pop %v850
        %v862 = vmul.f32 %v850, %v861
        %v863 = vsub.f32 1.0, %v862
        %v864 = vmul.f32 %v861, %v863
        %v865 = vadd.f32 %v861, %v864
        %vm866 = vweird.f32 %v850
        %vm867 = vweird.f32 %v861
        %vm868 = vmor %vm866, %vm867
        %v869 = vsel %vm868, %v861, %v865
        %v870 = vand.u32 2147483647, %v850
        %vm871 = vcmp.eq.f32.partialorder %v870, 8.507059e+37
        %v872 = vand.u32 %v850, 2147483648
        %v873 = vor.u32 1.1754944e-38, %v872
        %v874 = vsel %vm871, %v873, %v869
        %v875 = vrcp.pop %v853
        %v876 = vmul.f32 %v853, %v875
        %v877 = vsub.f32 1.0, %v876
        %v878 = vmul.f32 %v875, %v877
        %v879 = vadd.f32 %v875, %v878
        %vm880 = vweird.f32 %v853
        %vm881 = vweird.f32 %v875
        %vm882 = vmor %vm880, %vm881
        %v883 = vsel %vm882, %v875, %v879
        %v884 = vand.u32 2147483647, %v853
        %vm885 = vcmp.eq.f32.partialorder %v884, 8.507059e+37
        %v886 = vand.u32 %v853, 2147483648
        %v887 = vor.u32 1.1754944e-38, %v886
        %v888 = vsel %vm885, %v887, %v883
        %v889 = vrcp.pop %v856
        %v890 = vmul.f32 %v856, %v889
        %v891 = vsub.f32 1.0, %v890
        %v892 = vmul.f32 %v889, %v891
        %v893 = vadd.f32 %v889, %v892
        %vm894 = vweird.f32 %v856
        %vm895 = vweird.f32 %v889
        %vm896 = vmor %vm894, %vm895
        %v897 = vsel %vm896, %v889, %v893
        %v898 = vand.u32 2147483647, %v856
        %vm899 = vcmp.eq.f32.partialorder %v898, 8.507059e+37
        %v900 = vand.u32 %v856, 2147483648
        %v901 = vor.u32 1.1754944e-38, %v900
        %v902 = vsel %vm899, %v901, %v897
        %v903 = vrcp.pop %v859
        %v904 = vmul.f32 %v859, %v903
        %v905 = vsub.f32 1.0, %v904
        %v906 = vmul.f32 %v903, %v905
        %v907 = vadd.f32 %v903, %v906
        %vm908 = vweird.f32 %v859
        %vm909 = vweird.f32 %v903
        %vm910 = vmor %vm908, %vm909
        %v911 = vsel %vm910, %v903, %v907
        %v912 = vand.u32 2147483647, %v859
        %vm913 = vcmp.eq.f32.partialorder %v912, 8.507059e+37
        %v914 = vand.u32 %v859, 2147483648
        %v915 = vor.u32 1.1754944e-38, %v914
        %v916 = vsel %vm913, %v915, %v911
        %v917 = vmul.f32 %v821, %v874
        %v918 = vmul.f32 %v824, %v888
        %v919 = vmul.f32 %v827, %v902
        %v920 = vmul.f32 %v830, %v916
        %925 = vrot.lane.b32.xlu0 %v237, 32
        %v926 = vpop.permute.xlu0 %925
        %927 = vrot.lane.b32.xlu0 %v238, 32
        %v928 = vpop.permute.xlu0 %927
        %929 = vrot.lane.b32.xlu0 %v239, 32
        %v930 = vpop.permute.xlu0 %929
        %931 = vrot.lane.b32.xlu0 %v240, 32
        %v932 = vpop.permute.xlu0 %931
        %938 = vrot.lane.b32.xlu0 %v282, 32
        %v939 = vpop.permute.xlu0 %938
        %v942 = vsel %vm283, %v917, 0
        %v945 = vsel %vm283, %v918, 0
        %v948 = vsel %vm283, %v919, 0
        %v951 = vsel %vm283, %v920, 0
        %953 = vmatpush.msra.mxu0 0.0
        %954 = vmatpush.msra.mxu0 0.0
        %955 = vmatpush.msra.mxu0 0.0
        %956 = vmatpush.msra.mxu0 0.0
        %957 = vmatpush.msra.mxu0 0.0
        %958 = vmatpush.msra.mxu0 0.0
        %959 = vmatpush.msra.mxu0 0.0
        %960 = vmatpush.msra.mxu0 0.0
        %961 = vmatpush.msra.mxu0 0.0
        %962 = vmatpush.msra.mxu0 0.0
        %963 = vmatpush.msra.mxu0 0.0
        %964 = vmatpush.msra.mxu0 0.0
        %965 = vmatpush.msra.mxu0 %v932
        %966 = vmatpush.msra.mxu0 %v930
        %967 = vmatpush.msra.mxu0 %v928
        %968 = vmatpush.msra.mxu0 %v926
        %969 = vmatmul.f32.gmra.mxu0 %v942
        %v970 = vpop.f32.mrf.mxu0
        %v971 = vadd.f32 %v939, %v970
        %972 = vmatmul.f32.gmra.mxu0 %v945
        %v973 = vpop.f32.mrf.mxu0
        %v974 = vadd.f32 %v939, %v973
        %975 = vmatmul.f32.gmra.mxu0 %v948
        %v976 = vpop.f32.mrf.mxu0
        %v977 = vadd.f32 %v939, %v976
        %978 = vmatmul.f32.gmra.mxu0 %v951
        %v979 = vpop.f32.mrf.mxu0
        %v980 = vadd.f32 %v939, %v979
        %981 = vdwg.mxu0
        %v982 = vadd.f32 %v233, %v971
        %v983 = vadd.f32 %v234, %v974
        %v984 = vadd.f32 %v235, %v977
        %v985 = vadd.f32 %v236, %v980
        %v986 = vsel %vm283, %v982, 0.0
        %987 = vadd.xlane.f32.xlu0 %v986
        %v988 = vpop.xlane.xlu0 %987
        %v989 = vsel %vm283, %v983, 0.0
        %990 = vadd.xlane.f32.xlu0 %v989
        %v991 = vpop.xlane.xlu0 %990
        %v992 = vsel %vm283, %v984, 0.0
        %993 = vadd.xlane.f32.xlu0 %v992
        %v994 = vpop.xlane.xlu0 %993
        %v995 = vsel %vm283, %v985, 0.0
        %996 = vadd.xlane.f32.xlu0 %v995
        %v997 = vpop.xlane.xlu0 %996
        %v998 = vrcp.pop 32.0
        %v999 = vmul.f32 32.0, %v998
        %v1000 = vsub.f32 1.0, %v999
        %v1001 = vmul.f32 %v998, %v1000
        %v1002 = vadd.f32 %v998, %v1001
        %vm1003 = vweird.f32 %v998
        %v1004 = vsel %vm1003, %v998, %v1002
        %v1005 = vmul.f32 %v988, %v1004
        %v1006 = vmul.f32 %v991, %v1004
        %v1007 = vmul.f32 %v994, %v1004
        %v1008 = vmul.f32 %v997, %v1004
        %v1009 = vsub.f32 %v982, %v1005
        %v1010 = vsub.f32 %v983, %v1006
        %v1011 = vsub.f32 %v984, %v1007
        %v1012 = vsub.f32 %v985, %v1008
        %v1013 = vmul.f32 %v1009, %v1009
        %v1014 = vmul.f32 %v1010, %v1010
        %v1015 = vmul.f32 %v1011, %v1011
        %v1016 = vmul.f32 %v1012, %v1012
        %v1017 = vsel %vm283, %v1013, 0.0
        %1018 = vadd.xlane.f32.xlu0 %v1017
        %v1019 = vpop.xlane.xlu0 %1018
        %v1020 = vsel %vm283, %v1014, 0.0
        %1021 = vadd.xlane.f32.xlu0 %v1020
        %v1022 = vpop.xlane.xlu0 %1021
        %v1023 = vsel %vm283, %v1015, 0.0
        %1024 = vadd.xlane.f32.xlu0 %v1023
        %v1025 = vpop.xlane.xlu0 %1024
        %v1026 = vsel %vm283, %v1016, 0.0
        %1027 = vadd.xlane.f32.xlu0 %v1026
        %v1028 = vpop.xlane.xlu0 %1027
        %v1029 = vmul.f32 %v1019, %v1004
        %v1030 = vmul.f32 %v1022, %v1004
        %v1031 = vmul.f32 %v1025, %v1004
        %v1032 = vmul.f32 %v1028, %v1004
        %v1033 = vadd.f32 %v1029, 1e-05
        %v1034 = vadd.f32 %v1030, 1e-05
        %v1035 = vadd.f32 %v1031, 1e-05
        %v1036 = vadd.f32 %v1032, 1e-05
        %v1037 = vrsqrt.pop %v1033
        %v1038 = vmul.f32 %v1037, %v1033
        %v1039 = vmul.f32 %v1038, %v1037
        %v1040 = vmul.f32 0.5, %v1039
        %v1041 = vsub.f32 1.5, %v1040
        %v1042 = vmul.f32 %v1037, %v1041
        %vm1043 = vweird.f32 %v1033
        %vm1044 = vweird.f32 %v1037
        %vm1045 = vmor %vm1043, %vm1044
        %v1046 = vsel %vm1045, %v1037, %v1042
        %v1047 = vrsqrt.pop %v1034
        %v1048 = vmul.f32 %v1047, %v1034
        %v1049 = vmul.f32 %v1048, %v1047
        %v1050 = vmul.f32 0.5, %v1049
        %v1051 = vsub.f32 1.5, %v1050
        %v1052 = vmul.f32 %v1047, %v1051
        %vm1053 = vweird.f32 %v1034
        %vm1054 = vweird.f32 %v1047
        %vm1055 = vmor %vm1053, %vm1054
        %v1056 = vsel %vm1055, %v1047, %v1052
        %v1057 = vrsqrt.pop %v1035
        %v1058 = vmul.f32 %v1057, %v1035
        %v1059 = vmul.f32 %v1058, %v1057
        %v1060 = vmul.f32 0.5, %v1059
        %v1061 = vsub.f32 1.5, %v1060
        %v1062 = vmul.f32 %v1057, %v1061
        %vm1063 = vweird.f32 %v1035
        %vm1064 = vweird.f32 %v1057
        %vm1065 = vmor %vm1063, %vm1064
        %v1066 = vsel %vm1065, %v1057, %v1062
        %v1067 = vrsqrt.pop %v1036
        %v1068 = vmul.f32 %v1067, %v1036
        %v1069 = vmul.f32 %v1068, %v1067
        %v1070 = vmul.f32 0.5, %v1069
        %v1071 = vsub.f32 1.5, %v1070
        %v1072 = vmul.f32 %v1067, %v1071
        %vm1073 = vweird.f32 %v1036
        %vm1074 = vweird.f32 %v1067
        %vm1075 = vmor %vm1073, %vm1074
        %v1076 = vsel %vm1075, %v1067, %v1072
        %v1077 = vmul.f32 %v1009, %v1046
        %v1078 = vmul.f32 %v1010, %v1056
        %v1079 = vmul.f32 %v1011, %v1066
        %v1080 = vmul.f32 %v1012, %v1076
        %v1081 = vperm.slane %v261, 0
        %v1082 = vmul.f32 %v1077, %v1081
        %v1083 = vmul.f32 %v1078, %v1081
        %v1084 = vmul.f32 %v1079, %v1081
        %v1085 = vmul.f32 %v1080, %v1081
        %v1086 = vperm.slane %v262, 0
        %v1087 = vadd.f32 %v1082, %v1086
        %v1088 = vadd.f32 %v1083, %v1086
        %v1089 = vadd.f32 %v1084, %v1086
        %v1090 = vadd.f32 %v1085, %v1086
        %v1091 = vperm.slane %v258, 0
        %v1093 = vsel %vm283, %v1087, 0
        %v1096 = vsel %vm283, %v1088, 0
        %v1099 = vsel %vm283, %v1089, 0
        %v1102 = vsel %vm283, %v1090, 0
        %1104 = vmatpush.msra.mxu0 0.0
        %1105 = vmatpush.msra.mxu0 0.0
        %1106 = vmatpush.msra.mxu0 0.0
        %1107 = vmatpush.msra.mxu0 0.0
        %1108 = vmatpush.msra.mxu0 0.0
        %1109 = vmatpush.msra.mxu0 0.0
        %1110 = vmatpush.msra.mxu0 0.0
        %1111 = vmatpush.msra.mxu0 0.0
        %1112 = vmatpush.msra.mxu0 0.0
        %1113 = vmatpush.msra.mxu0 0.0
        %1114 = vmatpush.msra.mxu0 0.0
        %1115 = vmatpush.msra.mxu0 0.0
        %1116 = vmatpush.msra.mxu0 %v244
        %1117 = vmatpush.msra.mxu0 %v243
        %1118 = vmatpush.msra.mxu0 %v242
        %1119 = vmatpush.msra.mxu0 %v241
        %1120 = vmatmul.f32.gmra.mxu0 %v1093
        %v1121 = vpop.f32.mrf.mxu0
        %v1122 = vadd.f32 %v1091, %v1121
        %1123 = vmatmul.f32.gmra.mxu0 %v1096
        %v1124 = vpop.f32.mrf.mxu0
        %v1125 = vadd.f32 %v1091, %v1124
        %1126 = vmatmul.f32.gmra.mxu0 %v1099
        %v1127 = vpop.f32.mrf.mxu0
        %v1128 = vadd.f32 %v1091, %v1127
        %1129 = vmatmul.f32.gmra.mxu0 %v1102
        %v1130 = vpop.f32.mrf.mxu0
        %v1131 = vadd.f32 %v1091, %v1130
        %1132 = vdwg.mxu0
        %v1133 = vmax.f32 %v1122, 0.0
        %v1134 = vmax.f32 %v1125, 0.0
        %v1135 = vmax.f32 %v1128, 0.0
        %v1136 = vmax.f32 %v1131, 0.0
        %v1137 = vperm.slane %v259, 0
        %vm1138 = vcmask 523264
        %v1140 = vsel %vm1138, %v1133, 0
        %v1143 = vsel %vm1138, %v1134, 0
        %v1146 = vsel %vm1138, %v1135, 0
        %v1149 = vsel %vm1138, %v1136, 0
        %1151 = vmatpush.msra.mxu0 0.0
        %1152 = vmatpush.msra.mxu0 0.0
        %1153 = vmatpush.msra.mxu0 0.0
        %1154 = vmatpush.msra.mxu0 0.0
        %1155 = vmatpush.msra.mxu0 0.0
        %1156 = vmatpush.msra.mxu0 0.0
        %1157 = vmatpush.msra.mxu0 0.0
        %1158 = vmatpush.msra.mxu0 0.0
        %1159 = vmatpush.msra.mxu0 %v252
        %1160 = vmatpush.msra.mxu0 %v251
        %1161 = vmatpush.msra.mxu0 %v250
        %1162 = vmatpush.msra.mxu0 %v249
        %1163 = vmatpush.msra.mxu0 %v248
        %1164 = vmatpush.msra.mxu0 %v247
        %1165 = vmatpush.msra.mxu0 %v246
        %1166 = vmatpush.msra.mxu0 %v245
        %1167 = vmatmul.f32.gmra.mxu0 %v1140
        %v1168 = vpop.f32.mrf.mxu0
        %v1169 = vadd.f32 %v1137, %v1168
        %1170 = vmatmul.f32.gmra.mxu0 %v1143
        %v1171 = vpop.f32.mrf.mxu0
        %v1172 = vadd.f32 %v1137, %v1171
        %1173 = vmatmul.f32.gmra.mxu0 %v1146
        %v1174 = vpop.f32.mrf.mxu0
        %v1175 = vadd.f32 %v1137, %v1174
        %1176 = vmatmul.f32.gmra.mxu0 %v1149
        %v1177 = vpop.f32.mrf.mxu0
        %v1178 = vadd.f32 %v1137, %v1177
        %1179 = vdwg.mxu0
        %v1180 = vadd.f32 %v1087, %v1169
        %v1181 = vadd.f32 %v1088, %v1172
        %v1182 = vadd.f32 %v1089, %v1175
        %v1183 = vadd.f32 %v1090, %v1178
        %v1184 = vsel %vm283, %v1180, 0.0
        %1185 = vadd.xlane.f32.xlu0 %v1184
        %v1186 = vpop.xlane.xlu0 %1185
        %v1187 = vsel %vm283, %v1181, 0.0
        %1188 = vadd.xlane.f32.xlu0 %v1187
        %v1189 = vpop.xlane.xlu0 %1188
        %v1190 = vsel %vm283, %v1182, 0.0
        %1191 = vadd.xlane.f32.xlu0 %v1190
        %v1192 = vpop.xlane.xlu0 %1191
        %v1193 = vsel %vm283, %v1183, 0.0
        %1194 = vadd.xlane.f32.xlu0 %v1193
        %v1195 = vpop.xlane.xlu0 %1194
        %v1196 = vmul.f32 %v1186, %v1004
        %v1197 = vmul.f32 %v1189, %v1004
        %v1198 = vmul.f32 %v1192, %v1004
        %v1199 = vmul.f32 %v1195, %v1004
        %v1200 = vsub.f32 %v1180, %v1196
        %v1201 = vsub.f32 %v1181, %v1197
        %v1202 = vsub.f32 %v1182, %v1198
        %v1203 = vsub.f32 %v1183, %v1199
        %v1204 = vmul.f32 %v1200, %v1200
        %v1205 = vmul.f32 %v1201, %v1201
        %v1206 = vmul.f32 %v1202, %v1202
        %v1207 = vmul.f32 %v1203, %v1203
        %v1208 = vsel %vm283, %v1204, 0.0
        %1209 = vadd.xlane.f32.xlu0 %v1208
        %v1210 = vpop.xlane.xlu0 %1209
        %v1211 = vsel %vm283, %v1205, 0.0
        %1212 = vadd.xlane.f32.xlu0 %v1211
        %v1213 = vpop.xlane.xlu0 %1212
        %v1214 = vsel %vm283, %v1206, 0.0
        %1215 = vadd.xlane.f32.xlu0 %v1214
        %v1216 = vpop.xlane.xlu0 %1215
        %v1217 = vsel %vm283, %v1207, 0.0
        %1218 = vadd.xlane.f32.xlu0 %v1217
        %v1219 = vpop.xlane.xlu0 %1218
        %v1220 = vmul.f32 %v1210, %v1004
        %v1221 = vmul.f32 %v1213, %v1004
        %v1222 = vmul.f32 %v1216, %v1004
        %v1223 = vmul.f32 %v1219, %v1004
        %v1224 = vadd.f32 %v1220, 1e-05
        %v1225 = vadd.f32 %v1221, 1e-05
        %v1226 = vadd.f32 %v1222, 1e-05
        %v1227 = vadd.f32 %v1223, 1e-05
        %v1228 = vrsqrt.pop %v1224
        %v1229 = vmul.f32 %v1228, %v1224
        %v1230 = vmul.f32 %v1229, %v1228
        %v1231 = vmul.f32 0.5, %v1230
        %v1232 = vsub.f32 1.5, %v1231
        %v1233 = vmul.f32 %v1228, %v1232
        %vm1234 = vweird.f32 %v1224
        %vm1235 = vweird.f32 %v1228
        %vm1236 = vmor %vm1234, %vm1235
        %v1237 = vsel %vm1236, %v1228, %v1233
        %v1238 = vrsqrt.pop %v1225
        %v1239 = vmul.f32 %v1238, %v1225
        %v1240 = vmul.f32 %v1239, %v1238
        %v1241 = vmul.f32 0.5, %v1240
        %v1242 = vsub.f32 1.5, %v1241
        %v1243 = vmul.f32 %v1238, %v1242
        %vm1244 = vweird.f32 %v1225
        %vm1245 = vweird.f32 %v1238
        %vm1246 = vmor %vm1244, %vm1245
        %v1247 = vsel %vm1246, %v1238, %v1243
        %v1248 = vrsqrt.pop %v1226
        %v1249 = vmul.f32 %v1248, %v1226
        %v1250 = vmul.f32 %v1249, %v1248
        %v1251 = vmul.f32 0.5, %v1250
        %v1252 = vsub.f32 1.5, %v1251
        %v1253 = vmul.f32 %v1248, %v1252
        %vm1254 = vweird.f32 %v1226
        %vm1255 = vweird.f32 %v1248
        %vm1256 = vmor %vm1254, %vm1255
        %v1257 = vsel %vm1256, %v1248, %v1253
        %v1258 = vrsqrt.pop %v1227
        %v1259 = vmul.f32 %v1258, %v1227
        %v1260 = vmul.f32 %v1259, %v1258
        %v1261 = vmul.f32 0.5, %v1260
        %v1262 = vsub.f32 1.5, %v1261
        %v1263 = vmul.f32 %v1258, %v1262
        %vm1264 = vweird.f32 %v1227
        %vm1265 = vweird.f32 %v1258
        %vm1266 = vmor %vm1264, %vm1265
        %v1267 = vsel %vm1266, %v1258, %v1263
        %v1268 = vmul.f32 %v1200, %v1237
        %v1269 = vmul.f32 %v1201, %v1247
        %v1270 = vmul.f32 %v1202, %v1257
        %v1271 = vmul.f32 %v1203, %v1267
        %v1272 = vperm.slane %v263, 0
        %v1273 = vmul.f32 %v1268, %v1272
        %v1274 = vmul.f32 %v1269, %v1272
        %v1275 = vmul.f32 %v1270, %v1272
        %v1276 = vmul.f32 %v1271, %v1272
        %v1277 = vperm.slane %v264, 0
        %v1278 = vadd.f32 %v1273, %v1277
        %v1279 = vadd.f32 %v1274, %v1277
        %v1280 = vadd.f32 %v1275, %v1277
        %v1281 = vadd.f32 %v1276, %v1277
        %v1283 = vsel %vm283, %v1278, 0
        %v1286 = vsel %vm283, %v1279, 0
        %v1289 = vsel %vm283, %v1280, 0
        %v1292 = vsel %vm283, %v1281, 0
        %1294 = vmatpush.msra.mxu0 0.0
        %1295 = vmatpush.msra.mxu0 0.0
        %1296 = vmatpush.msra.mxu0 0.0
        %1297 = vmatpush.msra.mxu0 0.0
        %1298 = vmatpush.msra.mxu0 0.0
        %1299 = vmatpush.msra.mxu0 0.0
        %1300 = vmatpush.msra.mxu0 0.0
        %1301 = vmatpush.msra.mxu0 0.0
        %1302 = vmatpush.msra.mxu0 0.0
        %1303 = vmatpush.msra.mxu0 0.0
        %1304 = vmatpush.msra.mxu0 0.0
        %1305 = vmatpush.msra.mxu0 0.0
        %1306 = vmatpush.msra.mxu0 %v240
        %1307 = vmatpush.msra.mxu0 %v239
        %1308 = vmatpush.msra.mxu0 %v238
        %1309 = vmatpush.msra.mxu0 %v237
        %1310 = vmatmul.f32.gmra.mxu0 %v1283
        %v1311 = vpop.f32.mrf.mxu0
        %v1312 = vadd.f32 %v282, %v1311
        %1313 = vmatmul.f32.gmra.mxu0 %v1286
        %v1314 = vpop.f32.mrf.mxu0
        %v1315 = vadd.f32 %v282, %v1314
        %1316 = vmatmul.f32.gmra.mxu0 %v1289
        %v1317 = vpop.f32.mrf.mxu0
        %v1318 = vadd.f32 %v282, %v1317
        %1319 = vmatmul.f32.gmra.mxu0 %v1292
        %v1320 = vpop.f32.mrf.mxu0
        %v1321 = vadd.f32 %v282, %v1320
        %1322 = vdwg.mxu0
        %v1323 = vmul.f32 %v1312, 0.35355338
        %v1324 = vmul.f32 %v1315, 0.35355338
        %v1325 = vmul.f32 %v1318, 0.35355338
        %v1326 = vmul.f32 %v1321, 0.35355338
        %1331 = vrot.lane.b32.xlu0 %v1312, 96
        %v1332 = vpop.permute.xlu0 %1331
        %1333 = vrot.lane.b32.xlu0 %v1315, 96
        %v1334 = vpop.permute.xlu0 %1333
        %1335 = vrot.lane.b32.xlu0 %v1318, 96
        %v1336 = vpop.permute.xlu0 %1335
        %1337 = vrot.lane.b32.xlu0 %v1321, 96
        %v1338 = vpop.permute.xlu0 %1337
        %1343 = vmatpush.msra.mxu0 0.0
        %1344 = vmatpush.msra.mxu0 0.0
        %1345 = vmatpush.msra.mxu0 0.0
        %1346 = vmatpush.msra.mxu0 0.0
        %1347 = vmatpush.msra.mxu0 0.0
        %1348 = vmatpush.msra.mxu0 0.0
        %1349 = vmatpush.msra.mxu0 0.0
        %1350 = vmatpush.msra.mxu0 0.0
        %1351 = vmatpush.msra.mxu0 0.0
        %1352 = vmatpush.msra.mxu0 0.0
        %1353 = vmatpush.msra.mxu0 0.0
        %1354 = vmatpush.msra.mxu0 0.0
        %1355 = vmatpush.msra.mxu0 %v1338
        %1356 = vmatpush.msra.mxu0 %v1336
        %1357 = vmatpush.msra.mxu0 %v1334
        %1358 = vmatpush.msra.mxu0 %v1332
        %1359 = vmatmul.f32.gmra.mxu0 %v346
        %v1360 = vpop.f32.mrf.mxu0
        %v1361 = vadd.f32 0.0, %v1360
        %1362 = vmatmul.f32.gmra.mxu0 %v349
        %v1363 = vpop.f32.mrf.mxu0
        %v1364 = vadd.f32 0.0, %v1363
        %1365 = vmatmul.f32.gmra.mxu0 %v352
        %v1366 = vpop.f32.mrf.mxu0
        %v1367 = vadd.f32 0.0, %v1366
        %1368 = vmatmul.f32.gmra.mxu0 %v355
        %v1369 = vpop.f32.mrf.mxu0
        %v1370 = vadd.f32 0.0, %v1369
        %1371 = vmatmul.f32.gmra.mxu0 %v358
        %v1372 = vpop.f32.mrf.mxu0
        %v1373 = vadd.f32 0.0, %v1372
        %1374 = vmatmul.f32.gmra.mxu0 %v361
        %v1375 = vpop.f32.mrf.mxu0
        %v1376 = vadd.f32 0.0, %v1375
        %1377 = vmatmul.f32.gmra.mxu0 %v364
        %v1378 = vpop.f32.mrf.mxu0
        %v1379 = vadd.f32 0.0, %v1378
        %1380 = vmatmul.f32.gmra.mxu0 %v367
        %v1381 = vpop.f32.mrf.mxu0
        %v1382 = vadd.f32 0.0, %v1381
        %1383 = vmatmul.f32.gmra.mxu0 %v370
        %v1384 = vpop.f32.mrf.mxu0
        %v1385 = vadd.f32 0.0, %v1384
        %1386 = vmatmul.f32.gmra.mxu0 %v373
        %v1387 = vpop.f32.mrf.mxu0
        %v1388 = vadd.f32 0.0, %v1387
        %1389 = vmatmul.f32.gmra.mxu0 %v376
        %v1390 = vpop.f32.mrf.mxu0
        %v1391 = vadd.f32 0.0, %v1390
        %1392 = vmatmul.f32.gmra.mxu0 %v379
        %v1393 = vpop.f32.mrf.mxu0
        %v1394 = vadd.f32 0.0, %v1393
        %1395 = vmatmul.f32.gmra.mxu0 %v382
        %v1396 = vpop.f32.mrf.mxu0
        %v1397 = vadd.f32 0.0, %v1396
        %1398 = vmatmul.f32.gmra.mxu0 %v385
        %v1399 = vpop.f32.mrf.mxu0
        %v1400 = vadd.f32 0.0, %v1399
        %1401 = vmatmul.f32.gmra.mxu0 %v388
        %v1402 = vpop.f32.mrf.mxu0
        %v1403 = vadd.f32 0.0, %v1402
        %1404 = vmatmul.f32.gmra.mxu0 %v391
        %v1405 = vpop.f32.mrf.mxu0
        %v1406 = vadd.f32 0.0, %v1405
        %1407 = vdwg.mxu0
        %v1408 = vmul.f32 %v1361, %v459
        %v1409 = vmul.f32 %v1364, %v461
        %v1410 = vmul.f32 %v1367, %v463
        %v1411 = vmul.f32 %v1370, %v465
        %v1412 = vmul.f32 %v1373, %v467
        %v1413 = vmul.f32 %v1376, %v469
        %v1414 = vmul.f32 %v1379, %v471
        %v1415 = vmul.f32 %v1382, %v473
        %v1416 = vmul.f32 %v1385, %v475
        %v1417 = vmul.f32 %v1388, %v477
        %v1418 = vmul.f32 %v1391, %v479
        %v1419 = vmul.f32 %v1394, %v481
        %v1420 = vmul.f32 %v1397, %v483
        %v1421 = vmul.f32 %v1400, %v485
        %v1422 = vmul.f32 %v1403, %v487
        %v1423 = vmul.f32 %v1406, %v489
        %1424 = vrot.lane.b32.xlu0 %v1312, 64
        %v1425 = vpop.permute.xlu0 %1424
        %1426 = vrot.lane.b32.xlu0 %v1315, 64
        %v1427 = vpop.permute.xlu0 %1426
        %1428 = vrot.lane.b32.xlu0 %v1318, 64
        %v1429 = vpop.permute.xlu0 %1428
        %1430 = vrot.lane.b32.xlu0 %v1321, 64
        %v1431 = vpop.permute.xlu0 %1430
        %1436 = vmatpush.msra.mxu0 0.0
        %1437 = vmatpush.msra.mxu0 0.0
        %1438 = vmatpush.msra.mxu0 0.0
        %1439 = vmatpush.msra.mxu0 0.0
        %1440 = vmatpush.msra.mxu0 0.0
        %1441 = vmatpush.msra.mxu0 0.0
        %1442 = vmatpush.msra.mxu0 0.0
        %1443 = vmatpush.msra.mxu0 0.0
        %1444 = vmatpush.msra.mxu0 0.0
        %1445 = vmatpush.msra.mxu0 0.0
        %1446 = vmatpush.msra.mxu0 0.0
        %1447 = vmatpush.msra.mxu0 0.0
        %1448 = vmatpush.msra.mxu0 %v1431
        %1449 = vmatpush.msra.mxu0 %v1429
        %1450 = vmatpush.msra.mxu0 %v1427
        %1451 = vmatpush.msra.mxu0 %v1425
        %1452 = vmatmul.f32.gmra.mxu0 %v346
        %v1453 = vpop.f32.mrf.mxu0
        %v1454 = vadd.f32 0.0, %v1453
        %1455 = vmatmul.f32.gmra.mxu0 %v349
        %v1456 = vpop.f32.mrf.mxu0
        %v1457 = vadd.f32 0.0, %v1456
        %1458 = vmatmul.f32.gmra.mxu0 %v352
        %v1459 = vpop.f32.mrf.mxu0
        %v1460 = vadd.f32 0.0, %v1459
        %1461 = vmatmul.f32.gmra.mxu0 %v355
        %v1462 = vpop.f32.mrf.mxu0
        %v1463 = vadd.f32 0.0, %v1462
        %1464 = vmatmul.f32.gmra.mxu0 %v358
        %v1465 = vpop.f32.mrf.mxu0
        %v1466 = vadd.f32 0.0, %v1465
        %1467 = vmatmul.f32.gmra.mxu0 %v361
        %v1468 = vpop.f32.mrf.mxu0
        %v1469 = vadd.f32 0.0, %v1468
        %1470 = vmatmul.f32.gmra.mxu0 %v364
        %v1471 = vpop.f32.mrf.mxu0
        %v1472 = vadd.f32 0.0, %v1471
        %1473 = vmatmul.f32.gmra.mxu0 %v367
        %v1474 = vpop.f32.mrf.mxu0
        %v1475 = vadd.f32 0.0, %v1474
        %1476 = vmatmul.f32.gmra.mxu0 %v370
        %v1477 = vpop.f32.mrf.mxu0
        %v1478 = vadd.f32 0.0, %v1477
        %1479 = vmatmul.f32.gmra.mxu0 %v373
        %v1480 = vpop.f32.mrf.mxu0
        %v1481 = vadd.f32 0.0, %v1480
        %1482 = vmatmul.f32.gmra.mxu0 %v376
        %v1483 = vpop.f32.mrf.mxu0
        %v1484 = vadd.f32 0.0, %v1483
        %1485 = vmatmul.f32.gmra.mxu0 %v379
        %v1486 = vpop.f32.mrf.mxu0
        %v1487 = vadd.f32 0.0, %v1486
        %1488 = vmatmul.f32.gmra.mxu0 %v382
        %v1489 = vpop.f32.mrf.mxu0
        %v1490 = vadd.f32 0.0, %v1489
        %1491 = vmatmul.f32.gmra.mxu0 %v385
        %v1492 = vpop.f32.mrf.mxu0
        %v1493 = vadd.f32 0.0, %v1492
        %1494 = vmatmul.f32.gmra.mxu0 %v388
        %v1495 = vpop.f32.mrf.mxu0
        %v1496 = vadd.f32 0.0, %v1495
        %1497 = vmatmul.f32.gmra.mxu0 %v391
        %v1498 = vpop.f32.mrf.mxu0
        %v1499 = vadd.f32 0.0, %v1498
        %1500 = vdwg.mxu0
        %v1501 = vmul.f32 %v1454, %v459
        %v1502 = vmul.f32 %v1457, %v461
        %v1503 = vmul.f32 %v1460, %v463
        %v1504 = vmul.f32 %v1463, %v465
        %v1505 = vmul.f32 %v1466, %v467
        %v1506 = vmul.f32 %v1469, %v469
        %v1507 = vmul.f32 %v1472, %v471
        %v1508 = vmul.f32 %v1475, %v473
        %v1509 = vmul.f32 %v1478, %v475
        %v1510 = vmul.f32 %v1481, %v477
        %v1511 = vmul.f32 %v1484, %v479
        %v1512 = vmul.f32 %v1487, %v481
        %v1513 = vmul.f32 %v1490, %v483
        %v1514 = vmul.f32 %v1493, %v485
        %v1515 = vmul.f32 %v1496, %v487
        %v1516 = vmul.f32 %v1499, %v489
        %v1518 = vsel %vm283, %v1323, 0
        %v1521 = vsel %vm283, %v1324, 0
        %v1524 = vsel %vm283, %v1325, 0
        %v1527 = vsel %vm283, %v1326, 0
        %v1530 = vsel %vm283, %v1408, 0
        %v1533 = vsel %vm283, %v1409, 0
        %v1536 = vsel %vm283, %v1410, 0
        %v1539 = vsel %vm283, %v1411, 0
        %v1542 = vsel %vm283, %v1412, 0
        %v1545 = vsel %vm283, %v1413, 0
        %v1548 = vsel %vm283, %v1414, 0
        %v1551 = vsel %vm283, %v1415, 0
        %v1554 = vsel %vm283, %v1416, 0
        %v1557 = vsel %vm283, %v1417, 0
        %v1560 = vsel %vm283, %v1418, 0
        %v1563 = vsel %vm283, %v1419, 0
        %v1566 = vsel %vm283, %v1420, 0
        %v1569 = vsel %vm283, %v1421, 0
        %v1572 = vsel %vm283, %v1422, 0
        %v1575 = vsel %vm283, %v1423, 0
        %1577 = vmatpush.xpose.msra.mxu0 %v1575
        %1578 = vmatpush.xpose.msra.mxu0 %v1572
        %1579 = vmatpush.xpose.msra.mxu0 %v1569
        %1580 = vmatpush.xpose.msra.mxu0 %v1566
        %1581 = vmatpush.xpose.msra.mxu0 %v1563
        %1582 = vmatpush.xpose.msra.mxu0 %v1560
        %1583 = vmatpush.xpose.msra.mxu0 %v1557
        %1584 = vmatpush.xpose.msra.mxu0 %v1554
        %1585 = vmatpush.xpose.msra.mxu0 %v1551
        %1586 = vmatpush.xpose.msra.mxu0 %v1548
        %1587 = vmatpush.xpose.msra.mxu0 %v1545
        %1588 = vmatpush.xpose.msra.mxu0 %v1542
        %1589 = vmatpush.xpose.msra.mxu0 %v1539
        %1590 = vmatpush.xpose.msra.mxu0 %v1536
        %1591 = vmatpush.xpose.msra.mxu0 %v1533
        %1592 = vmatpush.xpose.msra.mxu0 %v1530
        %1593 = vmatmul.f32.gmra.mxu0 %v1518
        %v1594 = vpop.f32.mrf.mxu0
        %v1595 = vadd.f32 0.0, %v1594
        %1596 = vmatmul.f32.gmra.mxu0 %v1521
        %v1597 = vpop.f32.mrf.mxu0
        %v1598 = vadd.f32 0.0, %v1597
        %1599 = vmatmul.f32.gmra.mxu0 %v1524
        %v1600 = vpop.f32.mrf.mxu0
        %v1601 = vadd.f32 0.0, %v1600
        %1602 = vmatmul.f32.gmra.mxu0 %v1527
        %v1603 = vpop.f32.mrf.mxu0
        %v1604 = vadd.f32 0.0, %v1603
        %1605 = vdwg.mxu0
        %v1606 = vsel %vm283, %v1595, -inf
        %1607 = vmax.xlane.f32.xlu0 %v1606
        %v1608 = vpop.xlane.xlu0 %1607
        %v1609 = vsel %vm283, %v1598, -inf
        %1610 = vmax.xlane.f32.xlu0 %v1609
        %v1611 = vpop.xlane.xlu0 %1610
        %v1612 = vsel %vm283, %v1601, -inf
        %1613 = vmax.xlane.f32.xlu0 %v1612
        %v1614 = vpop.xlane.xlu0 %1613
        %v1615 = vsel %vm283, %v1604, -inf
        %1616 = vmax.xlane.f32.xlu0 %v1615
        %v1617 = vpop.xlane.xlu0 %1616
        %v1618 = vmul.f32 %v1608, %v716
        %v1619 = vmul.f32 %v1611, %v716
        %v1620 = vmul.f32 %v1614, %v716
        %v1621 = vmul.f32 %v1617, %v716
        %v1622 = vadd.f32 %v1618, 0.0
        %v1623 = vadd.f32 %v1619, 0.0
        %v1624 = vadd.f32 %v1620, 0.0
        %v1625 = vadd.f32 %v1621, 0.0
        %v1626 = vsel %vm725, %v1595, -inf
        %1627 = vmax.xlane.f32.xlu0 %v1626
        %v1628 = vpop.xlane.xlu0 %1627
        %v1629 = vsel %vm725, %v1598, -inf
        %1630 = vmax.xlane.f32.xlu0 %v1629
        %v1631 = vpop.xlane.xlu0 %1630
        %v1632 = vsel %vm725, %v1601, -inf
        %1633 = vmax.xlane.f32.xlu0 %v1632
        %v1634 = vpop.xlane.xlu0 %1633
        %v1635 = vsel %vm725, %v1604, -inf
        %1636 = vmax.xlane.f32.xlu0 %v1635
        %v1637 = vpop.xlane.xlu0 %1636
        %v1638 = vmul.f32 %v1628, %v738
        %v1639 = vmul.f32 %v1631, %v738
        %v1640 = vmul.f32 %v1634, %v738
        %v1641 = vmul.f32 %v1637, %v738
        %v1642 = vadd.f32 %v1622, %v1638
        %v1643 = vadd.f32 %v1623, %v1639
        %v1644 = vadd.f32 %v1624, %v1640
        %v1645 = vadd.f32 %v1625, %v1641
        %v1646 = vsel %vm747, %v1595, -inf
        %1647 = vmax.xlane.f32.xlu0 %v1646
        %v1648 = vpop.xlane.xlu0 %1647
        %v1649 = vsel %vm747, %v1598, -inf
        %1650 = vmax.xlane.f32.xlu0 %v1649
        %v1651 = vpop.xlane.xlu0 %1650
        %v1652 = vsel %vm747, %v1601, -inf
        %1653 = vmax.xlane.f32.xlu0 %v1652
        %v1654 = vpop.xlane.xlu0 %1653
        %v1655 = vsel %vm747, %v1604, -inf
        %1656 = vmax.xlane.f32.xlu0 %v1655
        %v1657 = vpop.xlane.xlu0 %1656
        %v1658 = vmul.f32 %v1648, %v760
        %v1659 = vmul.f32 %v1651, %v760
        %v1660 = vmul.f32 %v1654, %v760
        %v1661 = vmul.f32 %v1657, %v760
        %v1662 = vadd.f32 %v1642, %v1658
        %v1663 = vadd.f32 %v1643, %v1659
        %v1664 = vadd.f32 %v1644, %v1660
        %v1665 = vadd.f32 %v1645, %v1661
        %v1666 = vsel %vm769, %v1595, -inf
        %1667 = vmax.xlane.f32.xlu0 %v1666
        %v1668 = vpop.xlane.xlu0 %1667
        %v1669 = vsel %vm769, %v1598, -inf
        %1670 = vmax.xlane.f32.xlu0 %v1669
        %v1671 = vpop.xlane.xlu0 %1670
        %v1672 = vsel %vm769, %v1601, -inf
        %1673 = vmax.xlane.f32.xlu0 %v1672
        %v1674 = vpop.xlane.xlu0 %1673
        %v1675 = vsel %vm769, %v1604, -inf
        %1676 = vmax.xlane.f32.xlu0 %v1675
        %v1677 = vpop.xlane.xlu0 %1676
        %v1678 = vmul.f32 %v1668, %v782
        %v1679 = vmul.f32 %v1671, %v782
        %v1680 = vmul.f32 %v1674, %v782
        %v1681 = vmul.f32 %v1677, %v782
        %v1682 = vadd.f32 %v1662, %v1678
        %v1683 = vadd.f32 %v1663, %v1679
        %v1684 = vadd.f32 %v1664, %v1680
        %v1685 = vadd.f32 %v1665, %v1681
        %v1686 = vsub.f32 %v1595, %v1682
        %v1687 = vsub.f32 %v1598, %v1683
        %v1688 = vsub.f32 %v1601, %v1684
        %v1689 = vsub.f32 %v1604, %v1685
        %v1690 = vmul.f32 %v1686, 1.442695
        %v1691 = vpow.pop %v1690
        %v1692 = vmul.f32 %v1687, 1.442695
        %v1693 = vpow.pop %v1692
        %v1694 = vmul.f32 %v1688, 1.442695
        %v1695 = vpow.pop %v1694
        %v1696 = vmul.f32 %v1689, 1.442695
        %v1697 = vpow.pop %v1696
        %1698 = vmatpush.msra.mxu0 %v1516
        %1699 = vmatpush.msra.mxu0 %v1515
        %1700 = vmatpush.msra.mxu0 %v1514
        %1701 = vmatpush.msra.mxu0 %v1513
        %1702 = vmatpush.msra.mxu0 %v1512
        %1703 = vmatpush.msra.mxu0 %v1511
        %1704 = vmatpush.msra.mxu0 %v1510
        %1705 = vmatpush.msra.mxu0 %v1509
        %1706 = vmatpush.msra.mxu0 %v1508
        %1707 = vmatpush.msra.mxu0 %v1507
        %1708 = vmatpush.msra.mxu0 %v1506
        %1709 = vmatpush.msra.mxu0 %v1505
        %1710 = vmatpush.msra.mxu0 %v1504
        %1711 = vmatpush.msra.mxu0 %v1503
        %1712 = vmatpush.msra.mxu0 %v1502
        %1713 = vmatpush.msra.mxu0 %v1501
        %1714 = vmatmul.f32.gmra.mxu0 %v1691
        %v1715 = vpop.f32.mrf.mxu0
        %v1716 = vadd.f32 0.0, %v1715
        %1717 = vmatmul.f32.gmra.mxu0 %v1693
        %v1718 = vpop.f32.mrf.mxu0
        %v1719 = vadd.f32 0.0, %v1718
        %1720 = vmatmul.f32.gmra.mxu0 %v1695
        %v1721 = vpop.f32.mrf.mxu0
        %v1722 = vadd.f32 0.0, %v1721
        %1723 = vmatmul.f32.gmra.mxu0 %v1697
        %v1724 = vpop.f32.mrf.mxu0
        %v1725 = vadd.f32 0.0, %v1724
        %1726 = vdwg.mxu0
        %1727 = vmatpush.msra.mxu0 %v489
        %1728 = vmatpush.msra.mxu0 %v487
        %1729 = vmatpush.msra.mxu0 %v485
        %1730 = vmatpush.msra.mxu0 %v483
        %1731 = vmatpush.msra.mxu0 %v481
        %1732 = vmatpush.msra.mxu0 %v479
        %1733 = vmatpush.msra.mxu0 %v477
        %1734 = vmatpush.msra.mxu0 %v475
        %1735 = vmatpush.msra.mxu0 %v473
        %1736 = vmatpush.msra.mxu0 %v471
        %1737 = vmatpush.msra.mxu0 %v469
        %1738 = vmatpush.msra.mxu0 %v467
        %1739 = vmatpush.msra.mxu0 %v465
        %1740 = vmatpush.msra.mxu0 %v463
        %1741 = vmatpush.msra.mxu0 %v461
        %1742 = vmatpush.msra.mxu0 %v459
        %1743 = vmatmul.f32.gmra.mxu0 %v1691
        %v1744 = vpop.f32.mrf.mxu0
        %v1745 = vadd.f32 0.0, %v1744
        %1746 = vmatmul.f32.gmra.mxu0 %v1693
        %v1747 = vpop.f32.mrf.mxu0
        %v1748 = vadd.f32 0.0, %v1747
        %1749 = vmatmul.f32.gmra.mxu0 %v1695
        %v1750 = vpop.f32.mrf.mxu0
        %v1751 = vadd.f32 0.0, %v1750
        %1752 = vmatmul.f32.gmra.mxu0 %v1697
        %v1753 = vpop.f32.mrf.mxu0
        %v1754 = vadd.f32 0.0, %v1753
        %1755 = vdwg.mxu0
        %v1756 = vrcp.pop %v1745
        %v1757 = vmul.f32 %v1745, %v1756
        %v1758 = vsub.f32 1.0, %v1757
        %v1759 = vmul.f32 %v1756, %v1758
        %v1760 = vadd.f32 %v1756, %v1759
        %vm1761 = vweird.f32 %v1745
        %vm1762 = vweird.f32 %v1756
        %vm1763 = vmor %vm1761, %vm1762
        %v1764 = vsel %vm1763, %v1756, %v1760
        %v1765 = vand.u32 2147483647, %v1745
        %vm1766 = vcmp.eq.f32.partialorder %v1765, 8.507059e+37
        %v1767 = vand.u32 %v1745, 2147483648
        %v1768 = vor.u32 1.1754944e-38, %v1767
        %v1769 = vsel %vm1766, %v1768, %v1764
        %v1770 = vrcp.pop %v1748
        %v1771 = vmul.f32 %v1748, %v1770
        %v1772 = vsub.f32 1.0, %v1771
        %v1773 = vmul.f32 %v1770, %v1772
        %v1774 = vadd.f32 %v1770, %v1773
        %vm1775 = vweird.f32 %v1748
        %vm1776 = vweird.f32 %v1770
        %vm1777 = vmor %vm1775, %vm1776
        %v1778 = vsel %vm1777, %v1770, %v1774
        %v1779 = vand.u32 2147483647, %v1748
        %vm1780 = vcmp.eq.f32.partialorder %v1779, 8.507059e+37
        %v1781 = vand.u32 %v1748, 2147483648
        %v1782 = vor.u32 1.1754944e-38, %v1781
        %v1783 = vsel %vm1780, %v1782, %v1778
        %v1784 = vrcp.pop %v1751
        %v1785 = vmul.f32 %v1751, %v1784
        %v1786 = vsub.f32 1.0, %v1785
        %v1787 = vmul.f32 %v1784, %v1786
        %v1788 = vadd.f32 %v1784, %v1787
        %vm1789 = vweird.f32 %v1751
        %vm1790 = vweird.f32 %v1784
        %vm1791 = vmor %vm1789, %vm1790
        %v1792 = vsel %vm1791, %v1784, %v1788
        %v1793 = vand.u32 2147483647, %v1751
        %vm1794 = vcmp.eq.f32.partialorder %v1793, 8.507059e+37
        %v1795 = vand.u32 %v1751, 2147483648
        %v1796 = vor.u32 1.1754944e-38, %v1795
        %v1797 = vsel %vm1794, %v1796, %v1792
        %v1798 = vrcp.pop %v1754
        %v1799 = vmul.f32 %v1754, %v1798
        %v1800 = vsub.f32 1.0, %v1799
        %v1801 = vmul.f32 %v1798, %v1800
        %v1802 = vadd.f32 %v1798, %v1801
        %vm1803 = vweird.f32 %v1754
        %vm1804 = vweird.f32 %v1798
        %vm1805 = vmor %vm1803, %vm1804
        %v1806 = vsel %vm1805, %v1798, %v1802
        %v1807 = vand.u32 2147483647, %v1754
        %vm1808 = vcmp.eq.f32.partialorder %v1807, 8.507059e+37
        %v1809 = vand.u32 %v1754, 2147483648
        %v1810 = vor.u32 1.1754944e-38, %v1809
        %v1811 = vsel %vm1808, %v1810, %v1806
        %v1812 = vmul.f32 %v1716, %v1769
        %v1813 = vmul.f32 %v1719, %v1783
        %v1814 = vmul.f32 %v1722, %v1797
        %v1815 = vmul.f32 %v1725, %v1811
        %v1817 = vsel %vm283, %v1812, 0
        %v1820 = vsel %vm283, %v1813, 0
        %v1823 = vsel %vm283, %v1814, 0
        %v1826 = vsel %vm283, %v1815, 0
        %1828 = vmatpush.msra.mxu0 0.0
        %1829 = vmatpush.msra.mxu0 0.0
        %1830 = vmatpush.msra.mxu0 0.0
        %1831 = vmatpush.msra.mxu0 0.0
        %1832 = vmatpush.msra.mxu0 0.0
        %1833 = vmatpush.msra.mxu0 0.0
        %1834 = vmatpush.msra.mxu0 0.0
        %1835 = vmatpush.msra.mxu0 0.0
        %1836 = vmatpush.msra.mxu0 0.0
        %1837 = vmatpush.msra.mxu0 0.0
        %1838 = vmatpush.msra.mxu0 0.0
        %1839 = vmatpush.msra.mxu0 0.0
        %1840 = vmatpush.msra.mxu0 %v932
        %1841 = vmatpush.msra.mxu0 %v930
        %1842 = vmatpush.msra.mxu0 %v928
        %1843 = vmatpush.msra.mxu0 %v926
        %1844 = vmatmul.f32.gmra.mxu0 %v1817
        %v1845 = vpop.f32.mrf.mxu0
        %v1846 = vadd.f32 %v939, %v1845
        %1847 = vmatmul.f32.gmra.mxu0 %v1820
        %v1848 = vpop.f32.mrf.mxu0
        %v1849 = vadd.f32 %v939, %v1848
        %1850 = vmatmul.f32.gmra.mxu0 %v1823
        %v1851 = vpop.f32.mrf.mxu0
        %v1852 = vadd.f32 %v939, %v1851
        %1853 = vmatmul.f32.gmra.mxu0 %v1826
        %v1854 = vpop.f32.mrf.mxu0
        %v1855 = vadd.f32 %v939, %v1854
        %1856 = vdwg.mxu0
        %v1857 = vadd.f32 %v1278, %v1846
        %v1858 = vadd.f32 %v1279, %v1849
        %v1859 = vadd.f32 %v1280, %v1852
        %v1860 = vadd.f32 %v1281, %v1855
        %v1861 = vsel %vm283, %v1857, 0.0
        %1862 = vadd.xlane.f32.xlu0 %v1861
        %v1863 = vpop.xlane.xlu0 %1862
        %v1864 = vsel %vm283, %v1858, 0.0
        %1865 = vadd.xlane.f32.xlu0 %v1864
        %v1866 = vpop.xlane.xlu0 %1865
        %v1867 = vsel %vm283, %v1859, 0.0
        %1868 = vadd.xlane.f32.xlu0 %v1867
        %v1869 = vpop.xlane.xlu0 %1868
        %v1870 = vsel %vm283, %v1860, 0.0
        %1871 = vadd.xlane.f32.xlu0 %v1870
        %v1872 = vpop.xlane.xlu0 %1871
        %v1873 = vmul.f32 %v1863, %v1004
        %v1874 = vmul.f32 %v1866, %v1004
        %v1875 = vmul.f32 %v1869, %v1004
        %v1876 = vmul.f32 %v1872, %v1004
        %v1877 = vsub.f32 %v1857, %v1873
        %v1878 = vsub.f32 %v1858, %v1874
        %v1879 = vsub.f32 %v1859, %v1875
        %v1880 = vsub.f32 %v1860, %v1876
        %v1881 = vmul.f32 %v1877, %v1877
        %v1882 = vmul.f32 %v1878, %v1878
        %v1883 = vmul.f32 %v1879, %v1879
        %v1884 = vmul.f32 %v1880, %v1880
        %v1885 = vsel %vm283, %v1881, 0.0
        %1886 = vadd.xlane.f32.xlu0 %v1885
        %v1887 = vpop.xlane.xlu0 %1886
        %v1888 = vsel %vm283, %v1882, 0.0
        %1889 = vadd.xlane.f32.xlu0 %v1888
        %v1890 = vpop.xlane.xlu0 %1889
        %v1891 = vsel %vm283, %v1883, 0.0
        %1892 = vadd.xlane.f32.xlu0 %v1891
        %v1893 = vpop.xlane.xlu0 %1892
        %v1894 = vsel %vm283, %v1884, 0.0
        %1895 = vadd.xlane.f32.xlu0 %v1894
        %v1896 = vpop.xlane.xlu0 %1895
        %v1897 = vmul.f32 %v1887, %v1004
        %v1898 = vmul.f32 %v1890, %v1004
        %v1899 = vmul.f32 %v1893, %v1004
        %v1900 = vmul.f32 %v1896, %v1004
        %v1901 = vadd.f32 %v1897, 1e-05
        %v1902 = vadd.f32 %v1898, 1e-05
        %v1903 = vadd.f32 %v1899, 1e-05
        %v1904 = vadd.f32 %v1900, 1e-05
        %v1905 = vrsqrt.pop %v1901
        %v1906 = vmul.f32 %v1905, %v1901
        %v1907 = vmul.f32 %v1906, %v1905
        %v1908 = vmul.f32 0.5, %v1907
        %v1909 = vsub.f32 1.5, %v1908
        %v1910 = vmul.f32 %v1905, %v1909
        %vm1911 = vweird.f32 %v1901
        %vm1912 = vweird.f32 %v1905
        %vm1913 = vmor %vm1911, %vm1912
        %v1914 = vsel %vm1913, %v1905, %v1910
        %v1915 = vrsqrt.pop %v1902
        %v1916 = vmul.f32 %v1915, %v1902
        %v1917 = vmul.f32 %v1916, %v1915
        %v1918 = vmul.f32 0.5, %v1917
        %v1919 = vsub.f32 1.5, %v1918
        %v1920 = vmul.f32 %v1915, %v1919
        %vm1921 = vweird.f32 %v1902
        %vm1922 = vweird.f32 %v1915
        %vm1923 = vmor %vm1921, %vm1922
        %v1924 = vsel %vm1923, %v1915, %v1920
        %v1925 = vrsqrt.pop %v1903
        %v1926 = vmul.f32 %v1925, %v1903
        %v1927 = vmul.f32 %v1926, %v1925
        %v1928 = vmul.f32 0.5, %v1927
        %v1929 = vsub.f32 1.5, %v1928
        %v1930 = vmul.f32 %v1925, %v1929
        %vm1931 = vweird.f32 %v1903
        %vm1932 = vweird.f32 %v1925
        %vm1933 = vmor %vm1931, %vm1932
        %v1934 = vsel %vm1933, %v1925, %v1930
        %v1935 = vrsqrt.pop %v1904
        %v1936 = vmul.f32 %v1935, %v1904
        %v1937 = vmul.f32 %v1936, %v1935
        %v1938 = vmul.f32 0.5, %v1937
        %v1939 = vsub.f32 1.5, %v1938
        %v1940 = vmul.f32 %v1935, %v1939
        %vm1941 = vweird.f32 %v1904
        %vm1942 = vweird.f32 %v1935
        %vm1943 = vmor %vm1941, %vm1942
        %v1944 = vsel %vm1943, %v1935, %v1940
        %v1945 = vmul.f32 %v1877, %v1914
        %v1946 = vmul.f32 %v1878, %v1924
        %v1947 = vmul.f32 %v1879, %v1934
        %v1948 = vmul.f32 %v1880, %v1944
        %v1949 = vmul.f32 %v1945, %v1081
        %v1950 = vmul.f32 %v1946, %v1081
        %v1951 = vmul.f32 %v1947, %v1081
        %v1952 = vmul.f32 %v1948, %v1081
        %v1953 = vadd.f32 %v1949, %v1086
        %v1954 = vadd.f32 %v1950, %v1086
        %v1955 = vadd.f32 %v1951, %v1086
        %v1956 = vadd.f32 %v1952, %v1086
        %v1958 = vsel %vm283, %v1953, 0
        %v1961 = vsel %vm283, %v1954, 0
        %v1964 = vsel %vm283, %v1955, 0
        %v1967 = vsel %vm283, %v1956, 0
        %1969 = vmatpush.msra.mxu0 0.0
        %1970 = vmatpush.msra.mxu0 0.0
        %1971 = vmatpush.msra.mxu0 0.0
        %1972 = vmatpush.msra.mxu0 0.0
        %1973 = vmatpush.msra.mxu0 0.0
        %1974 = vmatpush.msra.mxu0 0.0
        %1975 = vmatpush.msra.mxu0 0.0
        %1976 = vmatpush.msra.mxu0 0.0
        %1977 = vmatpush.msra.mxu0 0.0
        %1978 = vmatpush.msra.mxu0 0.0
        %1979 = vmatpush.msra.mxu0 0.0
        %1980 = vmatpush.msra.mxu0 0.0
        %1981 = vmatpush.msra.mxu0 %v244
        %1982 = vmatpush.msra.mxu0 %v243
        %1983 = vmatpush.msra.mxu0 %v242
        %1984 = vmatpush.msra.mxu0 %v241
        %1985 = vmatmul.f32.gmra.mxu0 %v1958
        %v1986 = vpop.f32.mrf.mxu0
        %v1987 = vadd.f32 %v1091, %v1986
        %1988 = vmatmul.f32.gmra.mxu0 %v1961
        %v1989 = vpop.f32.mrf.mxu0
        %v1990 = vadd.f32 %v1091, %v1989
        %1991 = vmatmul.f32.gmra.mxu0 %v1964
        %v1992 = vpop.f32.mrf.mxu0
        %v1993 = vadd.f32 %v1091, %v1992
        %1994 = vmatmul.f32.gmra.mxu0 %v1967
        %v1995 = vpop.f32.mrf.mxu0
        %v1996 = vadd.f32 %v1091, %v1995
        %1997 = vdwg.mxu0
        %v1998 = vmax.f32 %v1987, 0.0
        %v1999 = vmax.f32 %v1990, 0.0
        %v2000 = vmax.f32 %v1993, 0.0
        %v2001 = vmax.f32 %v1996, 0.0
        %v2003 = vsel %vm1138, %v1998, 0
        %v2006 = vsel %vm1138, %v1999, 0
        %v2009 = vsel %vm1138, %v2000, 0
        %v2012 = vsel %vm1138, %v2001, 0
        %2014 = vmatpush.msra.mxu0 0.0
        %2015 = vmatpush.msra.mxu0 0.0
        %2016 = vmatpush.msra.mxu0 0.0
        %2017 = vmatpush.msra.mxu0 0.0
        %2018 = vmatpush.msra.mxu0 0.0
        %2019 = vmatpush.msra.mxu0 0.0
        %2020 = vmatpush.msra.mxu0 0.0
        %2021 = vmatpush.msra.mxu0 0.0
        %2022 = vmatpush.msra.mxu0 %v252
        %2023 = vmatpush.msra.mxu0 %v251
        %2024 = vmatpush.msra.mxu0 %v250
        %2025 = vmatpush.msra.mxu0 %v249
        %2026 = vmatpush.msra.mxu0 %v248
        %2027 = vmatpush.msra.mxu0 %v247
        %2028 = vmatpush.msra.mxu0 %v246
        %2029 = vmatpush.msra.mxu0 %v245
        %2030 = vmatmul.f32.gmra.mxu0 %v2003
        %v2031 = vpop.f32.mrf.mxu0
        %v2032 = vadd.f32 %v1137, %v2031
        %2033 = vmatmul.f32.gmra.mxu0 %v2006
        %v2034 = vpop.f32.mrf.mxu0
        %v2035 = vadd.f32 %v1137, %v2034
        %2036 = vmatmul.f32.gmra.mxu0 %v2009
        %v2037 = vpop.f32.mrf.mxu0
        %v2038 = vadd.f32 %v1137, %v2037
        %2039 = vmatmul.f32.gmra.mxu0 %v2012
        %v2040 = vpop.f32.mrf.mxu0
        %v2041 = vadd.f32 %v1137, %v2040
        %2042 = vdwg.mxu0
        %v2043 = vadd.f32 %v1953, %v2032
        %v2044 = vadd.f32 %v1954, %v2035
        %v2045 = vadd.f32 %v1955, %v2038
        %v2046 = vadd.f32 %v1956, %v2041
        %v2047 = vsel %vm283, %v2043, 0.0
        %2048 = vadd.xlane.f32.xlu0 %v2047
        %v2049 = vpop.xlane.xlu0 %2048
        %v2050 = vsel %vm283, %v2044, 0.0
        %2051 = vadd.xlane.f32.xlu0 %v2050
        %v2052 = vpop.xlane.xlu0 %2051
        %v2053 = vsel %vm283, %v2045, 0.0
        %2054 = vadd.xlane.f32.xlu0 %v2053
        %v2055 = vpop.xlane.xlu0 %2054
        %v2056 = vsel %vm283, %v2046, 0.0
        %2057 = vadd.xlane.f32.xlu0 %v2056
        %v2058 = vpop.xlane.xlu0 %2057
        %v2059 = vmul.f32 %v2049, %v1004
        %v2060 = vmul.f32 %v2052, %v1004
        %v2061 = vmul.f32 %v2055, %v1004
        %v2062 = vmul.f32 %v2058, %v1004
        %v2063 = vsub.f32 %v2043, %v2059
        %v2064 = vsub.f32 %v2044, %v2060
        %v2065 = vsub.f32 %v2045, %v2061
        %v2066 = vsub.f32 %v2046, %v2062
        %v2067 = vmul.f32 %v2063, %v2063
        %v2068 = vmul.f32 %v2064, %v2064
        %v2069 = vmul.f32 %v2065, %v2065
        %v2070 = vmul.f32 %v2066, %v2066
        %v2071 = vsel %vm283, %v2067, 0.0
        %2072 = vadd.xlane.f32.xlu0 %v2071
        %v2073 = vpop.xlane.xlu0 %2072
        %v2074 = vsel %vm283, %v2068, 0.0
        %2075 = vadd.xlane.f32.xlu0 %v2074
        %v2076 = vpop.xlane.xlu0 %2075
        %v2077 = vsel %vm283, %v2069, 0.0
        %2078 = vadd.xlane.f32.xlu0 %v2077
        %v2079 = vpop.xlane.xlu0 %2078
        %v2080 = vsel %vm283, %v2070, 0.0
        %2081 = vadd.xlane.f32.xlu0 %v2080
        %v2082 = vpop.xlane.xlu0 %2081
        %v2083 = vmul.f32 %v2073, %v1004
        %v2084 = vmul.f32 %v2076, %v1004
        %v2085 = vmul.f32 %v2079, %v1004
        %v2086 = vmul.f32 %v2082, %v1004
        %v2087 = vadd.f32 %v2083, 1e-05
        %v2088 = vadd.f32 %v2084, 1e-05
        %v2089 = vadd.f32 %v2085, 1e-05
        %v2090 = vadd.f32 %v2086, 1e-05
        %v2091 = vrsqrt.pop %v2087
        %v2092 = vmul.f32 %v2091, %v2087
        %v2093 = vmul.f32 %v2092, %v2091
        %v2094 = vmul.f32 0.5, %v2093
        %v2095 = vsub.f32 1.5, %v2094
        %v2096 = vmul.f32 %v2091, %v2095
        %vm2097 = vweird.f32 %v2087
        %vm2098 = vweird.f32 %v2091
        %vm2099 = vmor %vm2097, %vm2098
        %v2100 = vsel %vm2099, %v2091, %v2096
        %v2101 = vrsqrt.pop %v2088
        %v2102 = vmul.f32 %v2101, %v2088
        %v2103 = vmul.f32 %v2102, %v2101
        %v2104 = vmul.f32 0.5, %v2103
        %v2105 = vsub.f32 1.5, %v2104
        %v2106 = vmul.f32 %v2101, %v2105
        %vm2107 = vweird.f32 %v2088
        %vm2108 = vweird.f32 %v2101
        %vm2109 = vmor %vm2107, %vm2108
        %v2110 = vsel %vm2109, %v2101, %v2106
        %v2111 = vrsqrt.pop %v2089
        %v2112 = vmul.f32 %v2111, %v2089
        %v2113 = vmul.f32 %v2112, %v2111
        %v2114 = vmul.f32 0.5, %v2113
        %v2115 = vsub.f32 1.5, %v2114
        %v2116 = vmul.f32 %v2111, %v2115
        %vm2117 = vweird.f32 %v2089
        %vm2118 = vweird.f32 %v2111
        %vm2119 = vmor %vm2117, %vm2118
        %v2120 = vsel %vm2119, %v2111, %v2116
        %v2121 = vrsqrt.pop %v2090
        %v2122 = vmul.f32 %v2121, %v2090
        %v2123 = vmul.f32 %v2122, %v2121
        %v2124 = vmul.f32 0.5, %v2123
        %v2125 = vsub.f32 1.5, %v2124
        %v2126 = vmul.f32 %v2121, %v2125
        %vm2127 = vweird.f32 %v2090
        %vm2128 = vweird.f32 %v2121
        %vm2129 = vmor %vm2127, %vm2128
        %v2130 = vsel %vm2129, %v2121, %v2126
        %v2131 = vmul.f32 %v2063, %v2100
        %v2132 = vmul.f32 %v2064, %v2110
        %v2133 = vmul.f32 %v2065, %v2120
        %v2134 = vmul.f32 %v2066, %v2130
        %v2135 = vmul.f32 %v2131, %v1272
        %v2136 = vmul.f32 %v2132, %v1272
        %v2137 = vmul.f32 %v2133, %v1272
        %v2138 = vmul.f32 %v2134, %v1272
        %v2139 = vadd.f32 %v2135, %v1277
        %v2140 = vadd.f32 %v2136, %v1277
        %v2141 = vadd.f32 %v2137, %v1277
        %v2142 = vadd.f32 %v2138, %v1277
        %v2143 = vperm.slane %v260, 0
        %v2145 = vsel %vm283, %v2139, 0
        %v2148 = vsel %vm283, %v2140, 0
        %v2151 = vsel %vm283, %v2141, 0
        %v2154 = vsel %vm283, %v2142, 0
        %2156 = vmatpush.msra.mxu0 0.0
        %2157 = vmatpush.msra.mxu0 0.0
        %2158 = vmatpush.msra.mxu0 0.0
        %2159 = vmatpush.msra.mxu0 0.0
        %2160 = vmatpush.msra.mxu0 0.0
        %2161 = vmatpush.msra.mxu0 0.0
        %2162 = vmatpush.msra.mxu0 0.0
        %2163 = vmatpush.msra.mxu0 0.0
        %2164 = vmatpush.msra.mxu0 0.0
        %2165 = vmatpush.msra.mxu0 0.0
        %2166 = vmatpush.msra.mxu0 0.0
        %2167 = vmatpush.msra.mxu0 0.0
        %2168 = vmatpush.msra.mxu0 %v256
        %2169 = vmatpush.msra.mxu0 %v255
        %2170 = vmatpush.msra.mxu0 %v254
        %2171 = vmatpush.msra.mxu0 %v253
        %2172 = vmatmul.f32.gmra.mxu0 %v2145
        %v2173 = vpop.f32.mrf.mxu0
        %v2174 = vadd.f32 %v2143, %v2173
        %2175 = vmatmul.f32.gmra.mxu0 %v2148
        %v2176 = vpop.f32.mrf.mxu0
        %v2177 = vadd.f32 %v2143, %v2176
        %2178 = vmatmul.f32.gmra.mxu0 %v2151
        %v2179 = vpop.f32.mrf.mxu0
        %v2180 = vadd.f32 %v2143, %v2179
        %2181 = vmatmul.f32.gmra.mxu0 %v2154
        %v2182 = vpop.f32.mrf.mxu0
        %v2183 = vadd.f32 %v2143, %v2182
        %2184 = vdwg.mxu0
        %2185 = vst [vmem:[%s225] sm:$0xff] %v2174
        %2186 = vst [vmem:[%s225 + $0x8] sm:$0xff] %v2177
        %2187 = vst [vmem:[%s225 + $0x10] sm:$0xff] %v2180
        %2188 = vst [vmem:[%s225 + $0x18] sm:$0xff] %v2183
        %s2189 = sand.u32 %s117, 1
        %s2190 = scalar_lea.sflag [#allocation4], %s2189
        %s2191 = sand.u32 %s117, 1
        %s2192 = smul.addr %s2191, 32
        %s2193 = scalar_lea.vmem [#allocation7], %s2192
        // Predicated region
        $region45: #{tpu_custom_call.1} parent=35 // pred_check
          %p2194 = pneg %p127
        $region46: #{tpu_custom_call.1} parent=35 // pred_check_branch
          %2196 = sbr.rel (%p2194) target = $region48
        $region47: #{tpu_custom_call.1} parent=35 // pred_region
          %s2197 = smul.u32 4, %s20
          %2199 = vsyncadd %s2190, 0
          %s2200 = smul.addr %s2197, 8
          %s2201 = scalar_lea.hbm %s4, %s2200
          %s2202 = sshll.u32 %s2193, 4
          %s2203 = int_to_ptr.vmem [resolvable:$true] %s2202
          %s2204 = sshll.u32 %s2201, 4
          %s2205 = int_to_ptr.hbm [resolvable:$true] %s2204
          %2210 = dma.vmem_to_hbm [thread:$0]  %s2203, 512, %s2205, %s2190, 128, 128, 8
        $region48: #{tpu_custom_call.1} parent=35 // pred_fallthru
          _
      $region36: #{tpu_custom_call.1} parent=5 // pred_fallthru
        _
      %p2211 = scmp.le.s32.totalorder 2, %s15
      // Predicated region
      $region49: #{tpu_custom_call.1} parent=5 // pred_check
        %p2212 = pneg %p2211
      $region50: #{tpu_custom_call.1} parent=5 // pred_check_branch
        %2214 = sbr.rel (%p2212) target = $region52
      $region51: #{tpu_custom_call.1} parent=5 // pred_region
        %s2215 = ssub.s32 %s15, 2
        // Predicated region
        $region53: #{tpu_custom_call.1} parent=51 // pred_check
          %p2216 = pneg %p133
        $region54: #{tpu_custom_call.1} parent=51 // pred_check_branch
          %2218 = sbr.rel (%p2216) target = $region56
        $region55: #{tpu_custom_call.1} parent=51 // pred_region
          %s2219 = sand.u32 %s118, 1
          %s2220 = scalar_lea.sflag [#allocation4], %s2219
          %s2221 = sand.u32 %s118, 1
          %s2222 = smul.addr %s2221, 32
          %s2223 = scalar_lea.vmem [#allocation7], %s2222
          %2225 = dma.done %s2220, 512
        $region56: #{tpu_custom_call.1} parent=51 // pred_fallthru
          _
      $region52: #{tpu_custom_call.1} parent=5 // pred_fallthru
        _
    $region6: #{tpu_custom_call.1} parent=1 // loop_footer
      %s19 = sadd.s32 1, %s15
    $region7: #{tpu_custom_call.1} parent=1 // loop_footer_branch
      %14 = sbr.rel target = $region3
    $region8: #{tpu_custom_call.1} parent=1 // loop_exit
      _
    %2226 = vsyncpa [#allocation3], 1
    %s2227 = scalar_lea.sflag [#allocation3], 1
    %2228 = vsyncpa %s2227, 1
    %2229 = vsyncpa [#allocation6], 1
    %2230 = vsyncpa [#allocation4], 1
    %s2231 = scalar_lea.sflag [#allocation4], 1
    %2232 = vsyncpa %s2231, 1

</llo_original>
